<compile_context>
chip_gen: v5e
topology: v5e:2x2
jax: 0.10.0
libtpu: 0.0.40
codegen_flags: <defaults>
</compile_context>

<pallas_src>
import functools

import jax
import jax.numpy as jnp
from jax.experimental import pallas as pl
from jax.experimental.pallas import tpu as pltpu

DIM = 96
HEADS = 8
DIM_HEAD = 64
INNER = HEADS * DIM_HEAD            # 512
QKV_DIM = 3 * INNER                 # 1536
OUT_PAD = 128                       # lane-dense padded output width (96 -> 128)
SCALE = DIM_HEAD ** (-0.5)          # 0.125 (power of two -> exact in bf16)


def csm_attention_kernel(x_ref, wqkv_ref, wout_ref, bout_ref, o_ref, hid_ref, *, tq):
    tb, n, _ = x_ref.shape            # static block shape
    rows = tb * n

    # x arrives f32; cast to bf16 on the VPU (free slot under the MXU matmuls).
    x2d = x_ref[...].reshape(rows, DIM).astype(jnp.bfloat16)

    # --- to_qkv: one MXU matmul, bf16 in / f32 accumulate -> bf16 ---
    qkv = jnp.dot(x2d, wqkv_ref[...], preferred_element_type=jnp.float32)
    qkv = qkv.astype(jnp.bfloat16).reshape(tb, n, QKV_DIM)       # (TB, N, 1536)

    # Per-head attention; head outputs land in the bf16 hidden scratch so the
    # to_out projection is a single K=512 matmul after the loop.
    for h in range(HEADS):
        q3 = qkv[:, :, h * DIM_HEAD:(h + 1) * DIM_HEAD]                          # (TB,N,d)
        k3 = qkv[:, :, INNER + h * DIM_HEAD:INNER + (h + 1) * DIM_HEAD]          # (TB,N,d)
        v3 = qkv[:, :, 2 * INNER + h * DIM_HEAD:2 * INNER + (h + 1) * DIM_HEAD]  # (TB,N,d)

        # Stream q in chunks of tq rows so the f32 score tiles stay bounded.
        for q0 in range(0, n, tq):
            cur = min(tq, n - q0)
            qc = q3[:, q0:q0 + cur, :] * SCALE        # power-of-two scale, exact in bf16

            # q.kT as a last-dim contraction (no transpose materialized).
            dots = jnp.einsum('bqd,bkd->bqk', qc, k3,
                              preferred_element_type=jnp.float32)     # f32 (TB,cur,N)

            # Max-stabilized softmax in f32; reciprocal on the EUP slot.
            dots = dots - jnp.max(dots, axis=-1, keepdims=True)
            p = jnp.exp(dots)
            attn = p * pl.reciprocal(jnp.sum(p, axis=-1, keepdims=True), approx=True)

            out_c = jnp.einsum('bqk,bkd->bqd', attn.astype(jnp.bfloat16), v3,
                               preferred_element_type=jnp.float32)    # f32 (TB,cur,d)

            hid_ref[:, q0:q0 + cur, h * DIM_HEAD:(h + 1) * DIM_HEAD] = (
                out_c.astype(jnp.bfloat16))

    # --- to_out: one (rows,512)@(512,128) matmul + bias, lane-dense store ---
    hidden = hid_ref[...].reshape(rows, INNER)                        # bf16 (rows, 512)
    y = jnp.dot(hidden, wout_ref[...], preferred_element_type=jnp.float32)
    y = y + bout_ref[...]                                             # (1,128) broadcast
    o_ref[...] = y.reshape(tb, n, OUT_PAD).astype(o_ref.dtype)


def _estimate_vmem_bytes(tb, n, tq):
    """Honest per-grid-step live-byte count (double buffers + intermediates)."""
    rows = tb * n
    n_pad16 = -(-n // 16) * 16                        # bf16 sublane granule
    est = 0
    est += 2 * 2 * rows * 128 * 4                     # x + out blocks (f32, 128-lane pad), x2 buffers
    est += rows * QKV_DIM * (4 + 2)                   # qkv f32 accumulate + bf16 copy
    est += tb * n_pad16 * INNER * 2                   # bf16 hidden scratch (sublane padded)
    est += rows * OUT_PAD * 4                         # y f32
    est += tb * tq * n * 10                           # dots f32 + p f32 + attn bf16
    est += 2 * (DIM * QKV_DIM * 2 + INNER * OUT_PAD * 2 + 8 * 128 * 4)   # weights, x2 buffers
    return est


def _pick_tiles(B, N):
    """Pick (TB, TQ, vmem_limit_bytes) — generation aware via get_tpu_info."""
    tq = N if N <= 512 else 256                       # stream q-chunks for large N

    try:
        vmem_cap = int(pltpu.get_tpu_info().vmem_capacity_bytes)
    except Exception:
        vmem_cap = 64 * 1024 * 1024                   # v7x-safe fallback (64 MiB)
    tile_budget = vmem_cap // 2

    # Keep grid length >= 2 when B allows it, so v7x's two TensorCores both get work.
    max_tb = max(1, B // 2) if B >= 2 else 1
    row_target = 1024                                 # amortize ~0.35us/step, fill MXU M

    tb = 1
    if N <= 512:                                      # large N -> TB = 1 (q-chunked)
        for d in range(1, max_tb + 1):
            if B % d:
                continue
            if d * N > row_target:
                continue
            if _estimate_vmem_bytes(d, N, tq) > tile_budget:
                continue
            tb = d

    est = _estimate_vmem_bytes(tb, N, tq)
    vmem_limit = min((vmem_cap * 3) // 4, max(32 * 1024 * 1024, 2 * est))
    vmem_limit = max(vmem_limit, est + (4 << 20))     # never below the honest estimate
    return tb, tq, int(vmem_limit)


def csm_attention(x, wqkv_t, wout_t, bout):
    """x: (B, N, 96) f32.  wqkv_t: (96, 1536).  wout_t: (512, 96).  bout: (96,)."""
    B, N, D = x.shape
    assert D == DIM
    TB, TQ, vmem_limit = _pick_tiles(B, N)

    # Weights in bf16 for the MXU; to_out weight/bias padded 96 -> 128 lanes so the
    # output store is lane-dense (unmasked vst); the wrapper slices back to 96.
    wqkv_bf = wqkv_t.astype(jnp.bfloat16)                                    # (96, 1536)
    wout_pad = jnp.zeros((INNER, OUT_PAD), jnp.bfloat16).at[:, :DIM].set(
        wout_t.astype(jnp.bfloat16))                                         # (512, 128)
    bout_pad = jnp.zeros((1, OUT_PAD), jnp.float32).at[:, :DIM].set(
        bout.astype(jnp.float32).reshape(1, DIM))                            # (1, 128)

    out_pad = pl.pallas_call(
        functools.partial(csm_attention_kernel, tq=TQ),
        out_shape=jax.ShapeDtypeStruct((B, N, OUT_PAD), x.dtype),
        grid_spec=pltpu.PrefetchScalarGridSpec(
            num_scalar_prefetch=0,
            grid=(B // TB,),
            in_specs=[
                pl.BlockSpec((TB, N, DIM), lambda b: (b, 0, 0)),     # x stays f32
                pl.BlockSpec((DIM, QKV_DIM), lambda b: (0, 0)),      # resident weights
                pl.BlockSpec((INNER, OUT_PAD), lambda b: (0, 0)),
                pl.BlockSpec((1, OUT_PAD), lambda b: (0, 0)),
            ],
            out_specs=pl.BlockSpec((TB, N, OUT_PAD), lambda b: (b, 0, 0)),
            scratch_shapes=[pltpu.VMEM((TB, N, INNER), jnp.bfloat16)],
        ),
        compiler_params=pltpu.CompilerParams(
            dimension_semantics=("parallel",),
            vmem_limit_bytes=vmem_limit,
        ),
    )(x, wqkv_bf, wout_pad, bout_pad)

    return out_pad[..., :DIM]


def reference(x, wqkv_t, wout_t, bout):
    """Pure-JAX f32 reference mirroring the PyTorch forward."""
    b, n, _ = x.shape
    qkv = x @ wqkv_t                                   # (b, n, 1536)
    q, k, v = jnp.split(qkv, 3, axis=-1)               # each (b, n, 512)

    def to_heads(t):
        return t.reshape(b, n, HEADS, DIM_HEAD).transpose(0, 2, 1, 3)  # (b, h, n, d)

    q, k, v = map(to_heads, (q, k, v))
    dots = jnp.einsum('bhid,bhjd->bhij', q, k) * SCALE
    attn = jax.nn.softmax(dots, axis=-1)
    out = jnp.einsum('bhij,bhjd->bhid', attn, v)       # (b, h, n, d)
    out = out.transpose(0, 2, 1, 3).reshape(b, n, INNER)
    return out @ wout_t + bout


if __name__ == "__main__":
    B, N = 2, 8
    key = jax.random.PRNGKey(0)
    kx, kw1, kw2, kb = jax.random.split(key, 4)

    x = jax.random.normal(kx, (B, N, DIM), dtype=jnp.float32)
    # PyTorch shapes: to_qkv.weight (1536, 96), to_out[0].weight (96, 512),
    # to_out[0].bias (96,) — stored pre-transposed for row-major matmuls.
    wqkv_t = jax.random.normal(kw1, (DIM, QKV_DIM), dtype=jnp.float32) * 0.05
    wout_t = jax.random.normal(kw2, (INNER, DIM), dtype=jnp.float32) * 0.05
    bout = jax.random.normal(kb, (DIM,), dtype=jnp.float32) * 0.05

    y = jax.block_until_ready(csm_attention(x, wqkv_t, wout_t, bout))
    y_ref = reference(x, wqkv_t, wout_t, bout)

    assert y.shape == (B, N, DIM)
    # bf16 MXU matmuls + approx EUP reciprocal -> compare at ~1e-2 level vs f32 ref.
    err = float(jnp.max(jnp.abs(y - y_ref)))
    assert err < 5e-2, f"mismatch vs reference: max abs err = {err}"

    print("KERNEL_OK")
</pallas_src>

<mosaic_0001>
module attributes {stable_mosaic.version = 11 : i64} {
  func.func @csm_attention_kernel(%arg0: i32, %arg1: memref<1x8x96xf32, #tpu.memory_space<vmem>>, %arg2: memref<96x1536xbf16, #tpu.memory_space<vmem>>, %arg3: memref<512x128xbf16, #tpu.memory_space<vmem>>, %arg4: memref<1x128xf32, #tpu.memory_space<vmem>>, %arg5: memref<1x8x128xf32, #tpu.memory_space<vmem>>, %arg6: memref<1x8x512xbf16, #tpu.memory_space<vmem>>) attributes {dimension_semantics = [#tpu.dimension_semantics<parallel>], iteration_bounds = array<i64: 2>, scalar_prefetch = 0 : i64, scratch_operands = 1 : i64, tpu.core_type = #tpu.core_type<tc>, window_params = [{transform_indices = @transform_0, window_bounds = array<i64: 1, 8, 96>}, {pipeline_mode = #tpu.pipeline_mode<synchronous>, transform_indices = @transform_1, window_bounds = array<i64: 96, 1536>}, {pipeline_mode = #tpu.pipeline_mode<synchronous>, transform_indices = @transform_2, window_bounds = array<i64: 512, 128>}, {pipeline_mode = #tpu.pipeline_mode<synchronous>, transform_indices = @transform_3, window_bounds = array<i64: 1, 128>}, {transform_indices = @transform_4, window_bounds = array<i64: 1, 8, 128>}]} {
    %c0 = arith.constant 0 : index
    %c0_0 = arith.constant 0 : index
    %c0_1 = arith.constant 0 : index
    %0 = vector.load %arg1[%c0, %c0_0, %c0_1] : memref<1x8x96xf32, #tpu.memory_space<vmem>>, vector<1x8x96xf32>
    %1 = vector.shape_cast %0 : vector<1x8x96xf32> to vector<8x96xf32>
    %2 = arith.truncf %1 : vector<8x96xf32> to vector<8x96xbf16>
    %c0_2 = arith.constant 0 : index
    %c0_3 = arith.constant 0 : index
    %3 = vector.load %arg2[%c0_2, %c0_3] : memref<96x1536xbf16, #tpu.memory_space<vmem>>, vector<96x1536xbf16>
    %cst = arith.constant dense<0.000000e+00> : vector<8x1536xf32>
    %4 = tpu.matmul %2, %3, %cst {dimension_numbers = #tpu.dot_dimension_numbers<[1], [0], [0], [1], [0, 0, 1, 1], [], []>} : vector<8x96xbf16>, vector<96x1536xbf16>, vector<8x1536xf32> -> vector<8x1536xf32>
    %5 = arith.truncf %4 : vector<8x1536xf32> to vector<8x1536xbf16>
    %6 = vector.shape_cast %5 : vector<8x1536xbf16> to vector<1x8x1536xbf16>
    %7 = vector.extract_strided_slice %6 {offsets = [0, 0, 0], sizes = [1, 8, 64], strides = [1, 1, 1]} : vector<1x8x1536xbf16> to vector<1x8x64xbf16>
    %8 = vector.extract_strided_slice %6 {offsets = [0, 0, 512], sizes = [1, 8, 64], strides = [1, 1, 1]} : vector<1x8x1536xbf16> to vector<1x8x64xbf16>
    %9 = vector.extract_strided_slice %6 {offsets = [0, 0, 1024], sizes = [1, 8, 64], strides = [1, 1, 1]} : vector<1x8x1536xbf16> to vector<1x8x64xbf16>
    %cst_4 = arith.constant 1.250000e-01 : bf16
    %10 = vector.broadcast %cst_4 : bf16 to vector<1x8x64xbf16>
    %11 = arith.mulf %7, %10 : vector<1x8x64xbf16>
    "tpu.trace_start"() <{level = 10 : i32, message = "bqd,bkd->bqk"}> : () -> ()
    %cst_5 = arith.constant dense<0.000000e+00> : vector<1x8x8xf32>
    %12 = tpu.matmul %11, %8, %cst_5 {dimension_numbers = #tpu.dot_dimension_numbers<[2], [2], [1], [1], [0, 0, 0, 1, 1, 1], [0], [0]>} : vector<1x8x64xbf16>, vector<1x8x64xbf16>, vector<1x8x8xf32> -> vector<1x8x8xf32>
    "tpu.trace_stop"() : () -> ()
    %cst_6 = arith.constant dense<0xFF800000> : vector<1x8xf32>
    %13 = vector.multi_reduction <maximumf>, %12, %cst_6 [2] : vector<1x8x8xf32> to vector<1x8xf32>
    %14 = vector.shape_cast %13 : vector<1x8xf32> to vector<1x8x1xf32>
    %15 = vector.broadcast %14 : vector<1x8x1xf32> to vector<1x8x8xf32>
    %16 = arith.subf %12, %15 : vector<1x8x8xf32>
    %17 = math.exp %16 : vector<1x8x8xf32>
    %cst_7 = arith.constant dense<0.000000e+00> : vector<1x8xf32>
    %18 = vector.multi_reduction <add>, %17, %cst_7 [2] : vector<1x8x8xf32> to vector<1x8xf32>
    %19 = vector.shape_cast %18 : vector<1x8xf32> to vector<1x8x1xf32>
    %20 = tpu.reciprocal %19 {approx = true} : vector<1x8x1xf32> -> vector<1x8x1xf32>
    %21 = vector.broadcast %20 : vector<1x8x1xf32> to vector<1x8x8xf32>
    %22 = arith.mulf %17, %21 : vector<1x8x8xf32>
    %23 = arith.truncf %22 : vector<1x8x8xf32> to vector<1x8x8xbf16>
    "tpu.trace_start"() <{level = 10 : i32, message = "bqk,bkd->bqd"}> : () -> ()
    %cst_8 = arith.constant dense<0.000000e+00> : vector<1x8x64xf32>
    %24 = tpu.matmul %23, %9, %cst_8 {dimension_numbers = #tpu.dot_dimension_numbers<[2], [1], [1], [2], [0, 0, 0, 1, 1, 2], [0], [0]>} : vector<1x8x8xbf16>, vector<1x8x64xbf16>, vector<1x8x64xf32> -> vector<1x8x64xf32>
    "tpu.trace_stop"() : () -> ()
    %25 = arith.truncf %24 : vector<1x8x64xf32> to vector<1x8x64xbf16>
    %c0_9 = arith.constant 0 : index
    %c0_10 = arith.constant 0 : index
    %c0_11 = arith.constant 0 : index
    %26 = vector.load %arg6[%c0_9, %c0_10, %c0_11] : memref<1x8x512xbf16, #tpu.memory_space<vmem>>, vector<1x8x64xbf16>
    tpu.vector_store %arg6[%c0_9, %c0_10, %c0_11], %25 {strides = array<i32>} : memref<1x8x512xbf16, #tpu.memory_space<vmem>>, vector<1x8x64xbf16>,
    %27 = vector.extract_strided_slice %6 {offsets = [0, 0, 64], sizes = [1, 8, 64], strides = [1, 1, 1]} : vector<1x8x1536xbf16> to vector<1x8x64xbf16>
    %28 = vector.extract_strided_slice %6 {offsets = [0, 0, 576], sizes = [1, 8, 64], strides = [1, 1, 1]} : vector<1x8x1536xbf16> to vector<1x8x64xbf16>
    %29 = vector.extract_strided_slice %6 {offsets = [0, 0, 1088], sizes = [1, 8, 64], strides = [1, 1, 1]} : vector<1x8x1536xbf16> to vector<1x8x64xbf16>
    %cst_12 = arith.constant 1.250000e-01 : bf16
    %30 = vector.broadcast %cst_12 : bf16 to vector<1x8x64xbf16>
    %31 = arith.mulf %27, %30 : vector<1x8x64xbf16>
    "tpu.trace_start"() <{level = 10 : i32, message = "bqd,bkd->bqk"}> : () -> ()
    %cst_13 = arith.constant dense<0.000000e+00> : vector<1x8x8xf32>
    %32 = tpu.matmul %31, %28, %cst_13 {dimension_numbers = #tpu.dot_dimension_numbers<[2], [2], [1], [1], [0, 0, 0, 1, 1, 1], [0], [0]>} : vector<1x8x64xbf16>, vector<1x8x64xbf16>, vector<1x8x8xf32> -> vector<1x8x8xf32>
    "tpu.trace_stop"() : () -> ()
    %cst_14 = arith.constant dense<0xFF800000> : vector<1x8xf32>
    %33 = vector.multi_reduction <maximumf>, %32, %cst_14 [2] : vector<1x8x8xf32> to vector<1x8xf32>
    %34 = vector.shape_cast %33 : vector<1x8xf32> to vector<1x8x1xf32>
    %35 = vector.broadcast %34 : vector<1x8x1xf32> to vector<1x8x8xf32>
    %36 = arith.subf %32, %35 : vector<1x8x8xf32>
    %37 = math.exp %36 : vector<1x8x8xf32>
    %cst_15 = arith.constant dense<0.000000e+00> : vector<1x8xf32>
    %38 = vector.multi_reduction <add>, %37, %cst_15 [2] : vector<1x8x8xf32> to vector<1x8xf32>
    %39 = vector.shape_cast %38 : vector<1x8xf32> to vector<1x8x1xf32>
    %40 = tpu.reciprocal %39 {approx = true} : vector<1x8x1xf32> -> vector<1x8x1xf32>
    %41 = vector.broadcast %40 : vector<1x8x1xf32> to vector<1x8x8xf32>
    %42 = arith.mulf %37, %41 : vector<1x8x8xf32>
    %43 = arith.truncf %42 : vector<1x8x8xf32> to vector<1x8x8xbf16>
    "tpu.trace_start"() <{level = 10 : i32, message = "bqk,bkd->bqd"}> : () -> ()
    %cst_16 = arith.constant dense<0.000000e+00> : vector<1x8x64xf32>
    %44 = tpu.matmul %43, %29, %cst_16 {dimension_numbers = #tpu.dot_dimension_numbers<[2], [1], [1], [2], [0, 0, 0, 1, 1, 2], [0], [0]>} : vector<1x8x8xbf16>, vector<1x8x64xbf16>, vector<1x8x64xf32> -> vector<1x8x64xf32>
    "tpu.trace_stop"() : () -> ()
    %45 = arith.truncf %44 : vector<1x8x64xf32> to vector<1x8x64xbf16>
    %c0_17 = arith.constant 0 : index
    %c0_18 = arith.constant 0 : index
    %c64 = arith.constant 64 : index
    %46 = vector.load %arg6[%c0_17, %c0_18, %c64] : memref<1x8x512xbf16, #tpu.memory_space<vmem>>, vector<1x8x64xbf16>
    tpu.vector_store %arg6[%c0_17, %c0_18, %c64], %45 {strides = array<i32>} : memref<1x8x512xbf16, #tpu.memory_space<vmem>>, vector<1x8x64xbf16>,
    %47 = vector.extract_strided_slice %6 {offsets = [0, 0, 128], sizes = [1, 8, 64], strides = [1, 1, 1]} : vector<1x8x1536xbf16> to vector<1x8x64xbf16>
    %48 = vector.extract_strided_slice %6 {offsets = [0, 0, 640], sizes = [1, 8, 64], strides = [1, 1, 1]} : vector<1x8x1536xbf16> to vector<1x8x64xbf16>
    %49 = vector.extract_strided_slice %6 {offsets = [0, 0, 1152], sizes = [1, 8, 64], strides = [1, 1, 1]} : vector<1x8x1536xbf16> to vector<1x8x64xbf16>
    %cst_19 = arith.constant 1.250000e-01 : bf16
    %50 = vector.broadcast %cst_19 : bf16 to vector<1x8x64xbf16>
    %51 = arith.mulf %47, %50 : vector<1x8x64xbf16>
    "tpu.trace_start"() <{level = 10 : i32, message = "bqd,bkd->bqk"}> : () -> ()
    %cst_20 = arith.constant dense<0.000000e+00> : vector<1x8x8xf32>
    %52 = tpu.matmul %51, %48, %cst_20 {dimension_numbers = #tpu.dot_dimension_numbers<[2], [2], [1], [1], [0, 0, 0, 1, 1, 1], [0], [0]>} : vector<1x8x64xbf16>, vector<1x8x64xbf16>, vector<1x8x8xf32> -> vector<1x8x8xf32>
    "tpu.trace_stop"() : () -> ()
    %cst_21 = arith.constant dense<0xFF800000> : vector<1x8xf32>
    %53 = vector.multi_reduction <maximumf>, %52, %cst_21 [2] : vector<1x8x8xf32> to vector<1x8xf32>
    %54 = vector.shape_cast %53 : vector<1x8xf32> to vector<1x8x1xf32>
    %55 = vector.broadcast %54 : vector<1x8x1xf32> to vector<1x8x8xf32>
    %56 = arith.subf %52, %55 : vector<1x8x8xf32>
    %57 = math.exp %56 : vector<1x8x8xf32>
    %cst_22 = arith.constant dense<0.000000e+00> : vector<1x8xf32>
    %58 = vector.multi_reduction <add>, %57, %cst_22 [2] : vector<1x8x8xf32> to vector<1x8xf32>
    %59 = vector.shape_cast %58 : vector<1x8xf32> to vector<1x8x1xf32>
    %60 = tpu.reciprocal %59 {approx = true} : vector<1x8x1xf32> -> vector<1x8x1xf32>
    %61 = vector.broadcast %60 : vector<1x8x1xf32> to vector<1x8x8xf32>
    %62 = arith.mulf %57, %61 : vector<1x8x8xf32>
    %63 = arith.truncf %62 : vector<1x8x8xf32> to vector<1x8x8xbf16>
    "tpu.trace_start"() <{level = 10 : i32, message = "bqk,bkd->bqd"}> : () -> ()
    %cst_23 = arith.constant dense<0.000000e+00> : vector<1x8x64xf32>
    %64 = tpu.matmul %63, %49, %cst_23 {dimension_numbers = #tpu.dot_dimension_numbers<[2], [1], [1], [2], [0, 0, 0, 1, 1, 2], [0], [0]>} : vector<1x8x8xbf16>, vector<1x8x64xbf16>, vector<1x8x64xf32> -> vector<1x8x64xf32>
    "tpu.trace_stop"() : () -> ()
    %65 = arith.truncf %64 : vector<1x8x64xf32> to vector<1x8x64xbf16>
    %c0_24 = arith.constant 0 : index
    %c0_25 = arith.constant 0 : index
    %c128 = arith.constant 128 : index
    %66 = vector.load %arg6[%c0_24, %c0_25, %c128] : memref<1x8x512xbf16, #tpu.memory_space<vmem>>, vector<1x8x64xbf16>
    tpu.vector_store %arg6[%c0_24, %c0_25, %c128], %65 {strides = array<i32>} : memref<1x8x512xbf16, #tpu.memory_space<vmem>>, vector<1x8x64xbf16>,
    %67 = vector.extract_strided_slice %6 {offsets = [0, 0, 192], sizes = [1, 8, 64], strides = [1, 1, 1]} : vector<1x8x1536xbf16> to vector<1x8x64xbf16>
    %68 = vector.extract_strided_slice %6 {offsets = [0, 0, 704], sizes = [1, 8, 64], strides = [1, 1, 1]} : vector<1x8x1536xbf16> to vector<1x8x64xbf16>
    %69 = vector.extract_strided_slice %6 {offsets = [0, 0, 1216], sizes = [1, 8, 64], strides = [1, 1, 1]} : vector<1x8x1536xbf16> to vector<1x8x64xbf16>
    %cst_26 = arith.constant 1.250000e-01 : bf16
    %70 = vector.broadcast %cst_26 : bf16 to vector<1x8x64xbf16>
    %71 = arith.mulf %67, %70 : vector<1x8x64xbf16>
    "tpu.trace_start"() <{level = 10 : i32, message = "bqd,bkd->bqk"}> : () -> ()
    %cst_27 = arith.constant dense<0.000000e+00> : vector<1x8x8xf32>
    %72 = tpu.matmul %71, %68, %cst_27 {dimension_numbers = #tpu.dot_dimension_numbers<[2], [2], [1], [1], [0, 0, 0, 1, 1, 1], [0], [0]>} : vector<1x8x64xbf16>, vector<1x8x64xbf16>, vector<1x8x8xf32> -> vector<1x8x8xf32>
    "tpu.trace_stop"() : () -> ()
    %cst_28 = arith.constant dense<0xFF800000> : vector<1x8xf32>
    %73 = vector.multi_reduction <maximumf>, %72, %cst_28 [2] : vector<1x8x8xf32> to vector<1x8xf32>
    %74 = vector.shape_cast %73 : vector<1x8xf32> to vector<1x8x1xf32>
    %75 = vector.broadcast %74 : vector<1x8x1xf32> to vector<1x8x8xf32>
    %76 = arith.subf %72, %75 : vector<1x8x8xf32>
    %77 = math.exp %76 : vector<1x8x8xf32>
    %cst_29 = arith.constant dense<0.000000e+00> : vector<1x8xf32>
    %78 = vector.multi_reduction <add>, %77, %cst_29 [2] : vector<1x8x8xf32> to vector<1x8xf32>
    %79 = vector.shape_cast %78 : vector<1x8xf32> to vector<1x8x1xf32>
    %80 = tpu.reciprocal %79 {approx = true} : vector<1x8x1xf32> -> vector<1x8x1xf32>
    %81 = vector.broadcast %80 : vector<1x8x1xf32> to vector<1x8x8xf32>
    %82 = arith.mulf %77, %81 : vector<1x8x8xf32>
    %83 = arith.truncf %82 : vector<1x8x8xf32> to vector<1x8x8xbf16>
    "tpu.trace_start"() <{level = 10 : i32, message = "bqk,bkd->bqd"}> : () -> ()
    %cst_30 = arith.constant dense<0.000000e+00> : vector<1x8x64xf32>
    %84 = tpu.matmul %83, %69, %cst_30 {dimension_numbers = #tpu.dot_dimension_numbers<[2], [1], [1], [2], [0, 0, 0, 1, 1, 2], [0], [0]>} : vector<1x8x8xbf16>, vector<1x8x64xbf16>, vector<1x8x64xf32> -> vector<1x8x64xf32>
    "tpu.trace_stop"() : () -> ()
    %85 = arith.truncf %84 : vector<1x8x64xf32> to vector<1x8x64xbf16>
    %c0_31 = arith.constant 0 : index
    %c0_32 = arith.constant 0 : index
    %c192 = arith.constant 192 : index
    %86 = vector.load %arg6[%c0_31, %c0_32, %c192] : memref<1x8x512xbf16, #tpu.memory_space<vmem>>, vector<1x8x64xbf16>
    tpu.vector_store %arg6[%c0_31, %c0_32, %c192], %85 {strides = array<i32>} : memref<1x8x512xbf16, #tpu.memory_space<vmem>>, vector<1x8x64xbf16>,
    %87 = vector.extract_strided_slice %6 {offsets = [0, 0, 256], sizes = [1, 8, 64], strides = [1, 1, 1]} : vector<1x8x1536xbf16> to vector<1x8x64xbf16>
    %88 = vector.extract_strided_slice %6 {offsets = [0, 0, 768], sizes = [1, 8, 64], strides = [1, 1, 1]} : vector<1x8x1536xbf16> to vector<1x8x64xbf16>
    %89 = vector.extract_strided_slice %6 {offsets = [0, 0, 1280], sizes = [1, 8, 64], strides = [1, 1, 1]} : vector<1x8x1536xbf16> to vector<1x8x64xbf16>
    %cst_33 = arith.constant 1.250000e-01 : bf16
    %90 = vector.broadcast %cst_33 : bf16 to vector<1x8x64xbf16>
    %91 = arith.mulf %87, %90 : vector<1x8x64xbf16>
    "tpu.trace_start"() <{level = 10 : i32, message = "bqd,bkd->bqk"}> : () -> ()
    %cst_34 = arith.constant dense<0.000000e+00> : vector<1x8x8xf32>
    %92 = tpu.matmul %91, %88, %cst_34 {dimension_numbers = #tpu.dot_dimension_numbers<[2], [2], [1], [1], [0, 0, 0, 1, 1, 1], [0], [0]>} : vector<1x8x64xbf16>, vector<1x8x64xbf16>, vector<1x8x8xf32> -> vector<1x8x8xf32>
    "tpu.trace_stop"() : () -> ()
    %cst_35 = arith.constant dense<0xFF800000> : vector<1x8xf32>
    %93 = vector.multi_reduction <maximumf>, %92, %cst_35 [2] : vector<1x8x8xf32> to vector<1x8xf32>
    %94 = vector.shape_cast %93 : vector<1x8xf32> to vector<1x8x1xf32>
    %95 = vector.broadcast %94 : vector<1x8x1xf32> to vector<1x8x8xf32>
    %96 = arith.subf %92, %95 : vector<1x8x8xf32>
    %97 = math.exp %96 : vector<1x8x8xf32>
    %cst_36 = arith.constant dense<0.000000e+00> : vector<1x8xf32>
    %98 = vector.multi_reduction <add>, %97, %cst_36 [2] : vector<1x8x8xf32> to vector<1x8xf32>
    %99 = vector.shape_cast %98 : vector<1x8xf32> to vector<1x8x1xf32>
    %100 = tpu.reciprocal %99 {approx = true} : vector<1x8x1xf32> -> vector<1x8x1xf32>
    %101 = vector.broadcast %100 : vector<1x8x1xf32> to vector<1x8x8xf32>
    %102 = arith.mulf %97, %101 : vector<1x8x8xf32>
    %103 = arith.truncf %102 : vector<1x8x8xf32> to vector<1x8x8xbf16>
    "tpu.trace_start"() <{level = 10 : i32, message = "bqk,bkd->bqd"}> : () -> ()
    %cst_37 = arith.constant dense<0.000000e+00> : vector<1x8x64xf32>
    %104 = tpu.matmul %103, %89, %cst_37 {dimension_numbers = #tpu.dot_dimension_numbers<[2], [1], [1], [2], [0, 0, 0, 1, 1, 2], [0], [0]>} : vector<1x8x8xbf16>, vector<1x8x64xbf16>, vector<1x8x64xf32> -> vector<1x8x64xf32>
    "tpu.trace_stop"() : () -> ()
    %105 = arith.truncf %104 : vector<1x8x64xf32> to vector<1x8x64xbf16>
    %c0_38 = arith.constant 0 : index
    %c0_39 = arith.constant 0 : index
    %c256 = arith.constant 256 : index
    %106 = vector.load %arg6[%c0_38, %c0_39, %c256] : memref<1x8x512xbf16, #tpu.memory_space<vmem>>, vector<1x8x64xbf16>
    tpu.vector_store %arg6[%c0_38, %c0_39, %c256], %105 {strides = array<i32>} : memref<1x8x512xbf16, #tpu.memory_space<vmem>>, vector<1x8x64xbf16>,
    %107 = vector.extract_strided_slice %6 {offsets = [0, 0, 320], sizes = [1, 8, 64], strides = [1, 1, 1]} : vector<1x8x1536xbf16> to vector<1x8x64xbf16>
    %108 = vector.extract_strided_slice %6 {offsets = [0, 0, 832], sizes = [1, 8, 64], strides = [1, 1, 1]} : vector<1x8x1536xbf16> to vector<1x8x64xbf16>
    %109 = vector.extract_strided_slice %6 {offsets = [0, 0, 1344], sizes = [1, 8, 64], strides = [1, 1, 1]} : vector<1x8x1536xbf16> to vector<1x8x64xbf16>
    %cst_40 = arith.constant 1.250000e-01 : bf16
    %110 = vector.broadcast %cst_40 : bf16 to vector<1x8x64xbf16>
    %111 = arith.mulf %107, %110 : vector<1x8x64xbf16>
    "tpu.trace_start"() <{level = 10 : i32, message = "bqd,bkd->bqk"}> : () -> ()
    %cst_41 = arith.constant dense<0.000000e+00> : vector<1x8x8xf32>
    %112 = tpu.matmul %111, %108, %cst_41 {dimension_numbers = #tpu.dot_dimension_numbers<[2], [2], [1], [1], [0, 0, 0, 1, 1, 1], [0], [0]>} : vector<1x8x64xbf16>, vector<1x8x64xbf16>, vector<1x8x8xf32> -> vector<1x8x8xf32>
    "tpu.trace_stop"() : () -> ()
    %cst_42 = arith.constant dense<0xFF800000> : vector<1x8xf32>
    %113 = vector.multi_reduction <maximumf>, %112, %cst_42 [2] : vector<1x8x8xf32> to vector<1x8xf32>
    %114 = vector.shape_cast %113 : vector<1x8xf32> to vector<1x8x1xf32>
    %115 = vector.broadcast %114 : vector<1x8x1xf32> to vector<1x8x8xf32>
    %116 = arith.subf %112, %115 : vector<1x8x8xf32>
    %117 = math.exp %116 : vector<1x8x8xf32>
    %cst_43 = arith.constant dense<0.000000e+00> : vector<1x8xf32>
    %118 = vector.multi_reduction <add>, %117, %cst_43 [2] : vector<1x8x8xf32> to vector<1x8xf32>
    %119 = vector.shape_cast %118 : vector<1x8xf32> to vector<1x8x1xf32>
    %120 = tpu.reciprocal %119 {approx = true} : vector<1x8x1xf32> -> vector<1x8x1xf32>
    %121 = vector.broadcast %120 : vector<1x8x1xf32> to vector<1x8x8xf32>
    %122 = arith.mulf %117, %121 : vector<1x8x8xf32>
    %123 = arith.truncf %122 : vector<1x8x8xf32> to vector<1x8x8xbf16>
    "tpu.trace_start"() <{level = 10 : i32, message = "bqk,bkd->bqd"}> : () -> ()
    %cst_44 = arith.constant dense<0.000000e+00> : vector<1x8x64xf32>
    %124 = tpu.matmul %123, %109, %cst_44 {dimension_numbers = #tpu.dot_dimension_numbers<[2], [1], [1], [2], [0, 0, 0, 1, 1, 2], [0], [0]>} : vector<1x8x8xbf16>, vector<1x8x64xbf16>, vector<1x8x64xf32> -> vector<1x8x64xf32>
    "tpu.trace_stop"() : () -> ()
    %125 = arith.truncf %124 : vector<1x8x64xf32> to vector<1x8x64xbf16>
    %c0_45 = arith.constant 0 : index
    %c0_46 = arith.constant 0 : index
    %c320 = arith.constant 320 : index
    %126 = vector.load %arg6[%c0_45, %c0_46, %c320] : memref<1x8x512xbf16, #tpu.memory_space<vmem>>, vector<1x8x64xbf16>
    tpu.vector_store %arg6[%c0_45, %c0_46, %c320], %125 {strides = array<i32>} : memref<1x8x512xbf16, #tpu.memory_space<vmem>>, vector<1x8x64xbf16>,
    %127 = vector.extract_strided_slice %6 {offsets = [0, 0, 384], sizes = [1, 8, 64], strides = [1, 1, 1]} : vector<1x8x1536xbf16> to vector<1x8x64xbf16>
    %128 = vector.extract_strided_slice %6 {offsets = [0, 0, 896], sizes = [1, 8, 64], strides = [1, 1, 1]} : vector<1x8x1536xbf16> to vector<1x8x64xbf16>
    %129 = vector.extract_strided_slice %6 {offsets = [0, 0, 1408], sizes = [1, 8, 64], strides = [1, 1, 1]} : vector<1x8x1536xbf16> to vector<1x8x64xbf16>
    %cst_47 = arith.constant 1.250000e-01 : bf16
    %130 = vector.broadcast %cst_47 : bf16 to vector<1x8x64xbf16>
    %131 = arith.mulf %127, %130 : vector<1x8x64xbf16>
    "tpu.trace_start"() <{level = 10 : i32, message = "bqd,bkd->bqk"}> : () -> ()
    %cst_48 = arith.constant dense<0.000000e+00> : vector<1x8x8xf32>
    %132 = tpu.matmul %131, %128, %cst_48 {dimension_numbers = #tpu.dot_dimension_numbers<[2], [2], [1], [1], [0, 0, 0, 1, 1, 1], [0], [0]>} : vector<1x8x64xbf16>, vector<1x8x64xbf16>, vector<1x8x8xf32> -> vector<1x8x8xf32>
    "tpu.trace_stop"() : () -> ()
    %cst_49 = arith.constant dense<0xFF800000> : vector<1x8xf32>
    %133 = vector.multi_reduction <maximumf>, %132, %cst_49 [2] : vector<1x8x8xf32> to vector<1x8xf32>
    %134 = vector.shape_cast %133 : vector<1x8xf32> to vector<1x8x1xf32>
    %135 = vector.broadcast %134 : vector<1x8x1xf32> to vector<1x8x8xf32>
    %136 = arith.subf %132, %135 : vector<1x8x8xf32>
    %137 = math.exp %136 : vector<1x8x8xf32>
    %cst_50 = arith.constant dense<0.000000e+00> : vector<1x8xf32>
    %138 = vector.multi_reduction <add>, %137, %cst_50 [2] : vector<1x8x8xf32> to vector<1x8xf32>
    %139 = vector.shape_cast %138 : vector<1x8xf32> to vector<1x8x1xf32>
    %140 = tpu.reciprocal %139 {approx = true} : vector<1x8x1xf32> -> vector<1x8x1xf32>
    %141 = vector.broadcast %140 : vector<1x8x1xf32> to vector<1x8x8xf32>
    %142 = arith.mulf %137, %141 : vector<1x8x8xf32>
    %143 = arith.truncf %142 : vector<1x8x8xf32> to vector<1x8x8xbf16>
    "tpu.trace_start"() <{level = 10 : i32, message = "bqk,bkd->bqd"}> : () -> ()
    %cst_51 = arith.constant dense<0.000000e+00> : vector<1x8x64xf32>
    %144 = tpu.matmul %143, %129, %cst_51 {dimension_numbers = #tpu.dot_dimension_numbers<[2], [1], [1], [2], [0, 0, 0, 1, 1, 2], [0], [0]>} : vector<1x8x8xbf16>, vector<1x8x64xbf16>, vector<1x8x64xf32> -> vector<1x8x64xf32>
    "tpu.trace_stop"() : () -> ()
    %145 = arith.truncf %144 : vector<1x8x64xf32> to vector<1x8x64xbf16>
    %c0_52 = arith.constant 0 : index
    %c0_53 = arith.constant 0 : index
    %c384 = arith.constant 384 : index
    %146 = vector.load %arg6[%c0_52, %c0_53, %c384] : memref<1x8x512xbf16, #tpu.memory_space<vmem>>, vector<1x8x64xbf16>
    tpu.vector_store %arg6[%c0_52, %c0_53, %c384], %145 {strides = array<i32>} : memref<1x8x512xbf16, #tpu.memory_space<vmem>>, vector<1x8x64xbf16>,
    %147 = vector.extract_strided_slice %6 {offsets = [0, 0, 448], sizes = [1, 8, 64], strides = [1, 1, 1]} : vector<1x8x1536xbf16> to vector<1x8x64xbf16>
    %148 = vector.extract_strided_slice %6 {offsets = [0, 0, 960], sizes = [1, 8, 64], strides = [1, 1, 1]} : vector<1x8x1536xbf16> to vector<1x8x64xbf16>
    %149 = vector.extract_strided_slice %6 {offsets = [0, 0, 1472], sizes = [1, 8, 64], strides = [1, 1, 1]} : vector<1x8x1536xbf16> to vector<1x8x64xbf16>
    %cst_54 = arith.constant 1.250000e-01 : bf16
    %150 = vector.broadcast %cst_54 : bf16 to vector<1x8x64xbf16>
    %151 = arith.mulf %147, %150 : vector<1x8x64xbf16>
    "tpu.trace_start"() <{level = 10 : i32, message = "bqd,bkd->bqk"}> : () -> ()
    %cst_55 = arith.constant dense<0.000000e+00> : vector<1x8x8xf32>
    %152 = tpu.matmul %151, %148, %cst_55 {dimension_numbers = #tpu.dot_dimension_numbers<[2], [2], [1], [1], [0, 0, 0, 1, 1, 1], [0], [0]>} : vector<1x8x64xbf16>, vector<1x8x64xbf16>, vector<1x8x8xf32> -> vector<1x8x8xf32>
    "tpu.trace_stop"() : () -> ()
    %cst_56 = arith.constant dense<0xFF800000> : vector<1x8xf32>
    %153 = vector.multi_reduction <maximumf>, %152, %cst_56 [2] : vector<1x8x8xf32> to vector<1x8xf32>
    %154 = vector.shape_cast %153 : vector<1x8xf32> to vector<1x8x1xf32>
    %155 = vector.broadcast %154 : vector<1x8x1xf32> to vector<1x8x8xf32>
    %156 = arith.subf %152, %155 : vector<1x8x8xf32>
    %157 = math.exp %156 : vector<1x8x8xf32>
    %cst_57 = arith.constant dense<0.000000e+00> : vector<1x8xf32>
    %158 = vector.multi_reduction <add>, %157, %cst_57 [2] : vector<1x8x8xf32> to vector<1x8xf32>
    %159 = vector.shape_cast %158 : vector<1x8xf32> to vector<1x8x1xf32>
    %160 = tpu.reciprocal %159 {approx = true} : vector<1x8x1xf32> -> vector<1x8x1xf32>
    %161 = vector.broadcast %160 : vector<1x8x1xf32> to vector<1x8x8xf32>
    %162 = arith.mulf %157, %161 : vector<1x8x8xf32>
    %163 = arith.truncf %162 : vector<1x8x8xf32> to vector<1x8x8xbf16>
    "tpu.trace_start"() <{level = 10 : i32, message = "bqk,bkd->bqd"}> : () -> ()
    %cst_58 = arith.constant dense<0.000000e+00> : vector<1x8x64xf32>
    %164 = tpu.matmul %163, %149, %cst_58 {dimension_numbers = #tpu.dot_dimension_numbers<[2], [1], [1], [2], [0, 0, 0, 1, 1, 2], [0], [0]>} : vector<1x8x8xbf16>, vector<1x8x64xbf16>, vector<1x8x64xf32> -> vector<1x8x64xf32>
    "tpu.trace_stop"() : () -> ()
    %165 = arith.truncf %164 : vector<1x8x64xf32> to vector<1x8x64xbf16>
    %c0_59 = arith.constant 0 : index
    %c0_60 = arith.constant 0 : index
    %c448 = arith.constant 448 : index
    %166 = vector.load %arg6[%c0_59, %c0_60, %c448] : memref<1x8x512xbf16, #tpu.memory_space<vmem>>, vector<1x8x64xbf16>
    tpu.vector_store %arg6[%c0_59, %c0_60, %c448], %165 {strides = array<i32>} : memref<1x8x512xbf16, #tpu.memory_space<vmem>>, vector<1x8x64xbf16>,
    %c0_61 = arith.constant 0 : index
    %c0_62 = arith.constant 0 : index
    %c0_63 = arith.constant 0 : index
    %167 = vector.load %arg6[%c0_61, %c0_62, %c0_63] : memref<1x8x512xbf16, #tpu.memory_space<vmem>>, vector<1x8x512xbf16>
    %168 = vector.shape_cast %167 : vector<1x8x512xbf16> to vector<8x512xbf16>
    %c0_64 = arith.constant 0 : index
    %c0_65 = arith.constant 0 : index
    %169 = vector.load %arg3[%c0_64, %c0_65] : memref<512x128xbf16, #tpu.memory_space<vmem>>, vector<512x128xbf16>
    %cst_66 = arith.constant dense<0.000000e+00> : vector<8x128xf32>
    %170 = tpu.matmul %168, %169, %cst_66 {dimension_numbers = #tpu.dot_dimension_numbers<[1], [0], [0], [1], [0, 0, 1, 1], [], []>} : vector<8x512xbf16>, vector<512x128xbf16>, vector<8x128xf32> -> vector<8x128xf32>
    %c0_67 = arith.constant 0 : index
    %c0_68 = arith.constant 0 : index
    %171 = vector.load %arg4[%c0_67, %c0_68] : memref<1x128xf32, #tpu.memory_space<vmem>>, vector<1x128xf32>
    %172 = vector.broadcast %171 : vector<1x128xf32> to vector<8x128xf32>
    %173 = arith.addf %170, %172 : vector<8x128xf32>
    %174 = vector.shape_cast %173 : vector<8x128xf32> to vector<1x8x128xf32>
    %c0_69 = arith.constant 0 : index
    %c0_70 = arith.constant 0 : index
    %c0_71 = arith.constant 0 : index
    %175 = vector.load %arg5[%c0_69, %c0_70, %c0_71] : memref<1x8x128xf32, #tpu.memory_space<vmem>>, vector<1x8x128xf32>
    tpu.vector_store %arg5[%c0_69, %c0_70, %c0_71], %174 {strides = array<i32>} : memref<1x8x128xf32, #tpu.memory_space<vmem>>, vector<1x8x128xf32>,
    return
  }
  func.func @transform_0(%arg0: i32) -> (i32, i32, i32) {
    %c0_i32 = arith.constant 0 : i32
    %c0_i32_0 = arith.constant 0 : i32
    %c0_i32_1 = arith.constant 0 : i32
    return %arg0, %c0_i32, %c0_i32_0 : i32, i32, i32
  }
  func.func @transform_1(%arg0: i32) -> (i32, i32) {
    %c0_i32 = arith.constant 0 : i32
    %c0_i32_0 = arith.constant 0 : i32
    %c0_i32_1 = arith.constant 0 : i32
    return %c0_i32, %c0_i32_0 : i32, i32
  }
  func.func @transform_2(%arg0: i32) -> (i32, i32) {
    %c0_i32 = arith.constant 0 : i32
    %c0_i32_0 = arith.constant 0 : i32
    %c0_i32_1 = arith.constant 0 : i32
    return %c0_i32, %c0_i32_0 : i32, i32
  }
  func.func @transform_3(%arg0: i32) -> (i32, i32) {
    %c0_i32 = arith.constant 0 : i32
    %c0_i32_0 = arith.constant 0 : i32
    %c0_i32_1 = arith.constant 0 : i32
    return %c0_i32, %c0_i32_0 : i32, i32
  }
  func.func @transform_4(%arg0: i32) -> (i32, i32, i32) {
    %c0_i32 = arith.constant 0 : i32
    %c0_i32_0 = arith.constant 0 : i32
    %c0_i32_1 = arith.constant 0 : i32
    return %arg0, %c0_i32, %c0_i32_0 : i32, i32, i32
  }
}

</mosaic_0001>

<llo_original>
// kernel: tpu_custom_call.1
$region0: #{tpu_custom_call.1}
  #allocation0 [shape = 'u32[]', space=smem, size = 0x4, offset = 0x4, fixed_abs, tag = 'smem constant byte address 0x4 - core index']
  #allocation1 [shape = 'u32[72,128]{1,0:T(1,128)}', space=vmem, size = 0x9000, scoped, tag = 'internal scratch']
  #allocation2 [shape = 'bf16[1,8,512]{2,1,0:T(8,128)(2,1)}', space=vmem, size = 0x2000, scoped, tag = 'scratch operand']
  %s0 = inlined_call_operand.hbm [shape: f32[2,8,96], index: 0, kind: input, shape index: {}]
  %s1 = inlined_call_operand.hbm [shape: bf16[96,1536], index: 1, kind: input, shape index: {}]
  %s2 = inlined_call_operand.hbm [shape: bf16[512,128], index: 2, kind: input, shape index: {}]
  %s3 = inlined_call_operand.vmem [shape: f32[1,128], index: 3, kind: input, shape index: {}]
  %s4 = inlined_call_operand.hbm [shape: f32[2,8,128], index: 4, kind: output, shape index: {}]
  %s5 = sld [smem:[#allocation0]]
  $region61: #{tpu_custom_call.1} parent=0
    _
  %s7 = ssub.s32 1, %s5
  %s8 = scalar_select 0, %s7, %s5
  $region1: #{tpu_custom_call.1} parent=0
    #allocation3 [shape = 'u8[8192]{0}', space=vmem, size = 0x2000, scoped, tag = 'input window, operand 0']
    #allocation4 [shape = 's32[2]{0}', space=sflag, size = 0x8, scoped, tag = 'scoped memory for tpu_custom_call.1']
    #allocation5 [shape = 's32[2]{0}', space=sflag, size = 0x8, scoped, tag = 'scoped memory for tpu_custom_call.1']
    #allocation6 [shape = 'u8[294912]{0}', space=vmem, size = 0x48000, scoped, tag = 'input window, operand 1, single buffered']
    #allocation7 [shape = 's32[1]{0}', space=sflag, size = 0x4, scoped, tag = 'scoped memory for tpu_custom_call.1']
    #allocation8 [shape = 'u8[131072]{0}', space=vmem, size = 0x20000, scoped, tag = 'input window, operand 2, single buffered']
    #allocation9 [shape = 'u8[8192]{0}', space=vmem, size = 0x2000, scoped, tag = 'output window, operand 0']
    %9 = vsyncpa [#allocation4], 0
    %s10 = scalar_lea.sflag [#allocation4], 1
    %11 = vsyncpa %s10, 0
    %12 = vsyncpa [#allocation7], 0
    %13 = vsyncpa [#allocation5], 0
    %s14 = scalar_lea.sflag [#allocation5], 1
    %15 = vsyncpa %s14, 0
    loop: start=0, step=1, limit=4
    $region2: #{tpu_custom_call.1} parent=1 // loop_pre_header
      _
    $region3: #{tpu_custom_call.1} parent=1 // loop_header
      %s17 = sphi 0, %s21
      %p18 = scmp.ge.s32.totalorder %s17, 4
      %s27 = sphi 0, %s29
      %s30 = sphi 0, %s27
      %s31 = sphi 0, %s30
      %s47 = sphi 0, %s31
      %s51 = sphi 0, %s51
      %s53 = sphi 0, %s51
      %s54 = sphi 0, %s53
      %s68 = sphi 0, %s54
      %s72 = sphi 0, %s72
      %s74 = sphi 0, %s72
      %s75 = sphi 0, %s74
      %s89 = sphi 0, %s75
      %s93 = sphi 0, %s93
      %s95 = sphi 0, %s93
      %s96 = sphi 0, %s95
      %s110 = sphi 0, %s96
      %s116 = sphi 0, %s118
      %s119 = sphi 0, %s116
      %s120 = sphi 0, %s119
      %s136 = sphi 0, %s120
    $region4: #{tpu_custom_call.1} parent=1 // loop_header_branch
      %20 = sbr.rel (%p18) target = $region8
    $region5: #{tpu_custom_call.1} parent=1 // loop_body
      %s22 = ssub.s32 %s17, 1
      %s23 = ssub.s32 %s17, 2
      %s24 = sadd.s32 %s17, 1
      %s25 = ssub.s32 %s17, %s24
      %p26 = scmp.eq.s32.totalorder %s25, 0
      %s28 = sadd.s32 %s27, 1
      %s29 = scalar_select %p26, %s27, %s28
      %p32 = pneg %p26
      %p33 = scmp.eq.s32.totalorder %s17, 1
      %p34 = por %p32, %p33
      %p35 = scmp.ne.s32.totalorder %s27, %s30
      %p36 = scmp.eq.s32.totalorder %s17, 0
      %p37 = por %p35, %p36
      %p38 = scmp.ne.s32.totalorder %s27, %s30
      %p39 = scmp.eq.s32.totalorder %s22, 1
      %p40 = por %p38, %p39
      %p41 = scmp.ne.s32.totalorder %s30, %s31
      %p42 = scmp.eq.s32.totalorder %s22, 0
      %p43 = por %p41, %p42
      %p44 = scmp.ne.s32.totalorder %s30, %s31
      %p45 = scmp.eq.s32.totalorder %s23, 1
      %p46 = por %p44, %p45
      %p48 = scmp.ne.s32.totalorder %s31, %s47
      %p49 = scmp.eq.s32.totalorder %s23, 0
      %p50 = por %p48, %p49
      %s52 = sadd.s32 %s51, 1
      %p55 = scmp.eq.s32.totalorder %s17, 1
      %p56 = scmp.ne.s32.totalorder %s51, %s53
      %p57 = scmp.eq.s32.totalorder %s17, 0
      %p58 = por %p56, %p57
      %p59 = scmp.ne.s32.totalorder %s51, %s53
      %p60 = scmp.eq.s32.totalorder %s22, 1
      %p61 = por %p59, %p60
      %p62 = scmp.ne.s32.totalorder %s53, %s54
      %p63 = scmp.eq.s32.totalorder %s22, 0
      %p64 = por %p62, %p63
      %p65 = scmp.ne.s32.totalorder %s53, %s54
      %p66 = scmp.eq.s32.totalorder %s23, 1
      %p67 = por %p65, %p66
      %p69 = scmp.ne.s32.totalorder %s54, %s68
      %p70 = scmp.eq.s32.totalorder %s23, 0
      %p71 = por %p69, %p70
      %s73 = sadd.s32 %s72, 1
      %p76 = scmp.eq.s32.totalorder %s17, 1
      %p77 = scmp.ne.s32.totalorder %s72, %s74
      %p78 = scmp.eq.s32.totalorder %s17, 0
      %p79 = por %p77, %p78
      %p80 = scmp.ne.s32.totalorder %s72, %s74
      %p81 = scmp.eq.s32.totalorder %s22, 1
      %p82 = por %p80, %p81
      %p83 = scmp.ne.s32.totalorder %s74, %s75
      %p84 = scmp.eq.s32.totalorder %s22, 0
      %p85 = por %p83, %p84
      %p86 = scmp.ne.s32.totalorder %s74, %s75
      %p87 = scmp.eq.s32.totalorder %s23, 1
      %p88 = por %p86, %p87
      %p90 = scmp.ne.s32.totalorder %s75, %s89
      %p91 = scmp.eq.s32.totalorder %s23, 0
      %p92 = por %p90, %p91
      %s94 = sadd.s32 %s93, 1
      %p97 = scmp.eq.s32.totalorder %s17, 1
      %p98 = scmp.ne.s32.totalorder %s93, %s95
      %p99 = scmp.eq.s32.totalorder %s17, 0
      %p100 = por %p98, %p99
      %p101 = scmp.ne.s32.totalorder %s93, %s95
      %p102 = scmp.eq.s32.totalorder %s22, 1
      %p103 = por %p101, %p102
      %p104 = scmp.ne.s32.totalorder %s95, %s96
      %p105 = scmp.eq.s32.totalorder %s22, 0
      %p106 = por %p104, %p105
      %p107 = scmp.ne.s32.totalorder %s95, %s96
      %p108 = scmp.eq.s32.totalorder %s23, 1
      %p109 = por %p107, %p108
      %p111 = scmp.ne.s32.totalorder %s96, %s110
      %p112 = scmp.eq.s32.totalorder %s23, 0
      %p113 = por %p111, %p112
      %s114 = ssub.s32 %s17, %s24
      %p115 = scmp.eq.s32.totalorder %s114, 0
      %s117 = sadd.s32 %s116, 1
      %s118 = scalar_select %p115, %s116, %s117
      %p121 = pneg %p115
      %p122 = scmp.eq.s32.totalorder %s17, 1
      %p123 = por %p121, %p122
      %p124 = scmp.ne.s32.totalorder %s116, %s119
      %p125 = scmp.eq.s32.totalorder %s17, 0
      %p126 = por %p124, %p125
      %p127 = scmp.ne.s32.totalorder %s116, %s119
      %p128 = scmp.eq.s32.totalorder %s22, 1
      %p129 = por %p127, %p128
      %p130 = scmp.ne.s32.totalorder %s119, %s120
      %p131 = scmp.eq.s32.totalorder %s22, 0
      %p132 = por %p130, %p131
      %p133 = scmp.ne.s32.totalorder %s119, %s120
      %p134 = scmp.eq.s32.totalorder %s23, 1
      %p135 = por %p133, %p134
      %p137 = scmp.ne.s32.totalorder %s120, %s136
      %p138 = scmp.eq.s32.totalorder %s23, 0
      %p139 = por %p137, %p138
      %p140 = scmp.le.s32.totalorder 1, %s17
      %p141 = scmp.lt.s32.totalorder %s17, 3
      %p142 = pnand %p140, %p141
      %p143 = pneg %p142
      // Predicated region
      $region9: #{tpu_custom_call.1} parent=5 // pred_check
        _
      $region10: #{tpu_custom_call.1} parent=5 // pred_check_branch
        %145 = sbr.rel (%p142) target = $region12
      $region11: #{tpu_custom_call.1} parent=5 // pred_region
        %s146 = ssub.s32 %s17, 1
        // Predicated region
        $region13: #{tpu_custom_call.1} parent=11 // pred_check
          %p147 = pneg %p64
        $region14: #{tpu_custom_call.1} parent=11 // pred_check_branch
          %149 = sbr.rel (%p147) target = $region16
        $region15: #{tpu_custom_call.1} parent=11 // pred_region
          %151 = vsyncadd [#allocation7], 0
          %s152 = sshll.u32 %s1, 4
          %s153 = int_to_ptr.hbm [resolvable:$true] %s152
          %s154 = sshll.u32 [#allocation6], 4
          %s155 = int_to_ptr.vmem [resolvable:$true] %s154
          %160 = dma.hbm_to_vmem [thread:$0]  %s153, 9216, %s155, [#allocation7], 768, 768, 48
        $region16: #{tpu_custom_call.1} parent=11 // pred_fallthru
          _
        // Predicated region
        $region17: #{tpu_custom_call.1} parent=11 // pred_check
          %p161 = pneg %p85
        $region18: #{tpu_custom_call.1} parent=11 // pred_check_branch
          %163 = sbr.rel (%p161) target = $region20
        $region19: #{tpu_custom_call.1} parent=11 // pred_region
          %165 = vsyncadd [#allocation7], 0
          %s166 = sshll.u32 %s2, 4
          %s167 = int_to_ptr.hbm [resolvable:$true] %s166
          %s168 = sshll.u32 [#allocation8], 4
          %s169 = int_to_ptr.vmem [resolvable:$true] %s168
          %174 = dma.hbm_to_vmem [thread:$0]  %s167, 4096, %s169, [#allocation7], 64, 64, 4
        $region20: #{tpu_custom_call.1} parent=11 // pred_fallthru
          _
        // Predicated region
        $region21: #{tpu_custom_call.1} parent=11 // pred_check
          %p175 = pneg %p106
        $region22: #{tpu_custom_call.1} parent=11 // pred_check_branch
          %177 = sbr.rel (%p175) target = $region24
        $region23: #{tpu_custom_call.1} parent=11 // pred_region
          _
        $region24: #{tpu_custom_call.1} parent=11 // pred_fallthru
          _
      $region12: #{tpu_custom_call.1} parent=5 // pred_fallthru
        _
      %p178 = scmp.lt.s32.totalorder %s17, 2
      // Predicated region
      $region25: #{tpu_custom_call.1} parent=5 // pred_check
        %p179 = pneg %p178
      $region26: #{tpu_custom_call.1} parent=5 // pred_check_branch
        %181 = sbr.rel (%p179) target = $region28
      $region27: #{tpu_custom_call.1} parent=5 // pred_region
        // Predicated region
        $region29: #{tpu_custom_call.1} parent=27 // pred_check
          %p182 = pneg %p37
        $region30: #{tpu_custom_call.1} parent=27 // pred_check_branch
          %184 = sbr.rel (%p182) target = $region32
        $region31: #{tpu_custom_call.1} parent=27 // pred_region
          %s185 = sand.u32 %s27, 1
          %s186 = scalar_lea.sflag [#allocation4], %s185
          %s187 = sand.u32 %s27, 1
          %s188 = smul.addr %s187, 8
          %s189 = scalar_lea.vmem [#allocation3], %s188
          %191 = vsyncadd %s186, 0
          %s192 = smul.addr %s17, 8
          %s193 = scalar_lea.hbm %s0, %s192
          %s195 = sshll.u32 %s193, 4
          %s196 = int_to_ptr.hbm [resolvable:$true] %s195
          %s197 = sshll.u32 %s189, 4
          %s198 = int_to_ptr.vmem [resolvable:$true] %s197
          %200 = dma.hbm_to_vmem [thread:$0]  %s196, 128, %s198, %s186
        $region32: #{tpu_custom_call.1} parent=27 // pred_fallthru
          _
      $region28: #{tpu_custom_call.1} parent=5 // pred_fallthru
        _
      %p201 = scmp.le.s32.totalorder 1, %s17
      %p202 = scmp.lt.s32.totalorder %s17, 3
      %p203 = pnand %p201, %p202
      %p204 = pneg %p203
      // Predicated region
      $region33: #{tpu_custom_call.1} parent=5 // pred_check
        _
      $region34: #{tpu_custom_call.1} parent=5 // pred_check_branch
        %206 = sbr.rel (%p203) target = $region36
      $region35: #{tpu_custom_call.1} parent=5 // pred_region
        %s207 = ssub.s32 %s17, 1
        %s208 = sand.u32 %s30, 1
        %s209 = scalar_lea.sflag [#allocation4], %s208
        %s210 = sand.u32 %s30, 1
        %s211 = smul.addr %s210, 8
        %s212 = scalar_lea.vmem [#allocation3], %s211
        // Predicated region
        $region37: #{tpu_custom_call.1} parent=35 // pred_check
          %p213 = pneg %p43
        $region38: #{tpu_custom_call.1} parent=35 // pred_check_branch
          %215 = sbr.rel (%p213) target = $region40
        $region39: #{tpu_custom_call.1} parent=35 // pred_region
          %217 = dma.done %s209, 128
        $region40: #{tpu_custom_call.1} parent=35 // pred_fallthru
          _
        // Predicated region
        $region41: #{tpu_custom_call.1} parent=35 // pred_check
          %p218 = pneg %p64
        $region42: #{tpu_custom_call.1} parent=35 // pred_check_branch
          %220 = sbr.rel (%p218) target = $region44
        $region43: #{tpu_custom_call.1} parent=35 // pred_region
          %222 = dma.done [#allocation7], 9216
        $region44: #{tpu_custom_call.1} parent=35 // pred_fallthru
          _
        // Predicated region
        $region45: #{tpu_custom_call.1} parent=35 // pred_check
          %p223 = pneg %p85
        $region46: #{tpu_custom_call.1} parent=35 // pred_check_branch
          %225 = sbr.rel (%p223) target = $region48
        $region47: #{tpu_custom_call.1} parent=35 // pred_region
          %227 = dma.done [#allocation7], 4096
        $region48: #{tpu_custom_call.1} parent=35 // pred_fallthru
          _
        %s228 = sand.u32 %s30, 1
        %s229 = scalar_lea.sflag [#allocation4], %s228
        %s230 = sand.u32 %s30, 1
        %s231 = smul.addr %s230, 8
        %s232 = scalar_lea.vmem [#allocation3], %s231
        %p233 = pneg %p43
        %p234 = pneg %p40
        %p235 = pneg %p64
        %p236 = pneg %p61
        %p237 = pneg %p85
        %p238 = pneg %p82
        %p239 = pneg %p106
        %p240 = pneg %p103
        %p241 = pneg %p132
        %p242 = pneg %p129
        %s243 = sand.u32 %s119, 1
        %s244 = scalar_lea.sflag [#allocation5], %s243
        %s245 = sand.u32 %s119, 1
        %s246 = smul.addr %s245, 8
        %s247 = scalar_lea.vmem [#allocation9], %s246
        %v249 = vld [vmem:[%s212] sm:$0xff]
        %v250 = vpack.c.bf16 %v249, %v249
        %v251 = vld [vmem:[#allocation6] sm:$0xff]
        %v252 = vld [vmem:[#allocation6 + $0x8] sm:$0xff]
        %v253 = vld [vmem:[#allocation6 + $0x10] sm:$0xff]
        %v254 = vld [vmem:[#allocation6 + $0x18] sm:$0xff]
        %v255 = vld [vmem:[#allocation6 + $0x20] sm:$0xff]
        %v256 = vld [vmem:[#allocation6 + $0x28] sm:$0xff]
        %v257 = vld [vmem:[#allocation6 + $0x30] sm:$0xff]
        %v258 = vld [vmem:[#allocation6 + $0x38] sm:$0xff]
        %v259 = vld [vmem:[#allocation6 + $0x40] sm:$0xff]
        %v260 = vld [vmem:[#allocation6 + $0x48] sm:$0xff]
        %v261 = vld [vmem:[#allocation6 + $0x50] sm:$0xff]
        %v262 = vld [vmem:[#allocation6 + $0x58] sm:$0xff]
        %v263 = vld [vmem:[#allocation6 + $0x60] sm:$0xff]
        %v264 = vld [vmem:[#allocation6 + $0x68] sm:$0xff]
        %v265 = vld [vmem:[#allocation6 + $0x70] sm:$0xff]
        %v266 = vld [vmem:[#allocation6 + $0x78] sm:$0xff]
        %v267 = vld [vmem:[#allocation6 + $0x80] sm:$0xff]
        %v268 = vld [vmem:[#allocation6 + $0x88] sm:$0xff]
        %v269 = vld [vmem:[#allocation6 + $0x90] sm:$0xff]
        %v270 = vld [vmem:[#allocation6 + $0x98] sm:$0xff]
        %v271 = vld [vmem:[#allocation6 + $0xa0] sm:$0xff]
        %v272 = vld [vmem:[#allocation6 + $0xa8] sm:$0xff]
        %v273 = vld [vmem:[#allocation6 + $0xb0] sm:$0xff]
        %v274 = vld [vmem:[#allocation6 + $0xb8] sm:$0xff]
        %v275 = vld [vmem:[#allocation6 + $0xc0] sm:$0xff]
        %v276 = vld [vmem:[#allocation6 + $0xc8] sm:$0xff]
        %v277 = vld [vmem:[#allocation6 + $0xd0] sm:$0xff]
        %v278 = vld [vmem:[#allocation6 + $0xd8] sm:$0xff]
        %v279 = vld [vmem:[#allocation6 + $0xe0] sm:$0xff]
        %v280 = vld [vmem:[#allocation6 + $0xe8] sm:$0xff]
        %v281 = vld [vmem:[#allocation6 + $0xf0] sm:$0xff]
        %v282 = vld [vmem:[#allocation6 + $0xf8] sm:$0xff]
        %v283 = vld [vmem:[#allocation6 + $0x100] sm:$0xff]
        %v284 = vld [vmem:[#allocation6 + $0x108] sm:$0xff]
        %v285 = vld [vmem:[#allocation6 + $0x110] sm:$0xff]
        %v286 = vld [vmem:[#allocation6 + $0x118] sm:$0xff]
        %v287 = vld [vmem:[#allocation6 + $0x120] sm:$0xff]
        %v288 = vld [vmem:[#allocation6 + $0x128] sm:$0xff]
        %v289 = vld [vmem:[#allocation6 + $0x130] sm:$0xff]
        %v290 = vld [vmem:[#allocation6 + $0x138] sm:$0xff]
        %v291 = vld [vmem:[#allocation6 + $0x140] sm:$0xff]
        %v292 = vld [vmem:[#allocation6 + $0x148] sm:$0xff]
        %v293 = vld [vmem:[#allocation6 + $0x150] sm:$0xff]
        %v294 = vld [vmem:[#allocation6 + $0x158] sm:$0xff]
        %v295 = vld [vmem:[#allocation6 + $0x160] sm:$0xff]
        %v296 = vld [vmem:[#allocation6 + $0x168] sm:$0xff]
        %v297 = vld [vmem:[#allocation6 + $0x170] sm:$0xff]
        %v298 = vld [vmem:[#allocation6 + $0x178] sm:$0xff]
        %v299 = vld [vmem:[#allocation6 + $0x180] sm:$0xff]
        %v300 = vld [vmem:[#allocation6 + $0x188] sm:$0xff]
        %v301 = vld [vmem:[#allocation6 + $0x190] sm:$0xff]
        %v302 = vld [vmem:[#allocation6 + $0x198] sm:$0xff]
        %v303 = vld [vmem:[#allocation6 + $0x1a0] sm:$0xff]
        %v304 = vld [vmem:[#allocation6 + $0x1a8] sm:$0xff]
        %v305 = vld [vmem:[#allocation6 + $0x1b0] sm:$0xff]
        %v306 = vld [vmem:[#allocation6 + $0x1b8] sm:$0xff]
        %v307 = vld [vmem:[#allocation6 + $0x1c0] sm:$0xff]
        %v308 = vld [vmem:[#allocation6 + $0x1c8] sm:$0xff]
        %v309 = vld [vmem:[#allocation6 + $0x1d0] sm:$0xff]
        %v310 = vld [vmem:[#allocation6 + $0x1d8] sm:$0xff]
        %v311 = vld [vmem:[#allocation6 + $0x1e0] sm:$0xff]
        %v312 = vld [vmem:[#allocation6 + $0x1e8] sm:$0xff]
        %v313 = vld [vmem:[#allocation6 + $0x1f0] sm:$0xff]
        %v314 = vld [vmem:[#allocation6 + $0x1f8] sm:$0xff]
        %v315 = vld [vmem:[#allocation6 + $0x200] sm:$0xff]
        %v316 = vld [vmem:[#allocation6 + $0x208] sm:$0xff]
        %v317 = vld [vmem:[#allocation6 + $0x210] sm:$0xff]
        %v318 = vld [vmem:[#allocation6 + $0x218] sm:$0xff]
        %v319 = vld [vmem:[#allocation6 + $0x220] sm:$0xff]
        %v320 = vld [vmem:[#allocation6 + $0x228] sm:$0xff]
        %v321 = vld [vmem:[#allocation6 + $0x230] sm:$0xff]
        %v322 = vld [vmem:[#allocation6 + $0x238] sm:$0xff]
        %v395 = vunpack.c.l.b16 %v251
        %v396 = vunpack.c.h.b16 %v251
        %v397 = vunpack.c.l.b16 %v252
        %v398 = vunpack.c.h.b16 %v252
        %v399 = vunpack.c.l.b16 %v253
        %v400 = vunpack.c.h.b16 %v253
        %v401 = vunpack.c.l.b16 %v254
        %v402 = vunpack.c.h.b16 %v254
        %v403 = vunpack.c.l.b16 %v255
        %v404 = vunpack.c.h.b16 %v255
        %v405 = vunpack.c.l.b16 %v256
        %v406 = vunpack.c.h.b16 %v256
        %v407 = vunpack.c.l.b16 %v257
        %v408 = vunpack.c.h.b16 %v257
        %v409 = vunpack.c.l.b16 %v258
        %v410 = vunpack.c.h.b16 %v258
        %v411 = vunpack.c.l.b16 %v259
        %v412 = vunpack.c.h.b16 %v259
        %v413 = vunpack.c.l.b16 %v260
        %v414 = vunpack.c.h.b16 %v260
        %v415 = vunpack.c.l.b16 %v261
        %v416 = vunpack.c.h.b16 %v261
        %v417 = vunpack.c.l.b16 %v262
        %v418 = vunpack.c.h.b16 %v262
        %v419 = vunpack.c.l.b16 %v263
        %v420 = vunpack.c.h.b16 %v263
        %v421 = vunpack.c.l.b16 %v264
        %v422 = vunpack.c.h.b16 %v264
        %v423 = vunpack.c.l.b16 %v265
        %v424 = vunpack.c.h.b16 %v265
        %v425 = vunpack.c.l.b16 %v266
        %v426 = vunpack.c.h.b16 %v266
        %v427 = vunpack.c.l.b16 %v267
        %v428 = vunpack.c.h.b16 %v267
        %v429 = vunpack.c.l.b16 %v268
        %v430 = vunpack.c.h.b16 %v268
        %v431 = vunpack.c.l.b16 %v269
        %v432 = vunpack.c.h.b16 %v269
        %v433 = vunpack.c.l.b16 %v270
        %v434 = vunpack.c.h.b16 %v270
        %v435 = vunpack.c.l.b16 %v271
        %v436 = vunpack.c.h.b16 %v271
        %v437 = vunpack.c.l.b16 %v272
        %v438 = vunpack.c.h.b16 %v272
        %v439 = vunpack.c.l.b16 %v273
        %v440 = vunpack.c.h.b16 %v273
        %v441 = vunpack.c.l.b16 %v274
        %v442 = vunpack.c.h.b16 %v274
        %v443 = vunpack.c.l.b16 %v275
        %v444 = vunpack.c.h.b16 %v275
        %v445 = vunpack.c.l.b16 %v276
        %v446 = vunpack.c.h.b16 %v276
        %v447 = vunpack.c.l.b16 %v277
        %v448 = vunpack.c.h.b16 %v277
        %v449 = vunpack.c.l.b16 %v278
        %v450 = vunpack.c.h.b16 %v278
        %v451 = vunpack.c.l.b16 %v279
        %v452 = vunpack.c.h.b16 %v279
        %v453 = vunpack.c.l.b16 %v280
        %v454 = vunpack.c.h.b16 %v280
        %v455 = vunpack.c.l.b16 %v281
        %v456 = vunpack.c.h.b16 %v281
        %v457 = vunpack.c.l.b16 %v282
        %v458 = vunpack.c.h.b16 %v282
        %v459 = vunpack.c.l.b16 %v283
        %v460 = vunpack.c.h.b16 %v283
        %v461 = vunpack.c.l.b16 %v284
        %v462 = vunpack.c.h.b16 %v284
        %v463 = vunpack.c.l.b16 %v285
        %v464 = vunpack.c.h.b16 %v285
        %v465 = vunpack.c.l.b16 %v286
        %v466 = vunpack.c.h.b16 %v286
        %v467 = vunpack.c.l.b16 %v287
        %v468 = vunpack.c.h.b16 %v287
        %v469 = vunpack.c.l.b16 %v288
        %v470 = vunpack.c.h.b16 %v288
        %v471 = vunpack.c.l.b16 %v289
        %v472 = vunpack.c.h.b16 %v289
        %v473 = vunpack.c.l.b16 %v290
        %v474 = vunpack.c.h.b16 %v290
        %v475 = vunpack.c.l.b16 %v291
        %v476 = vunpack.c.h.b16 %v291
        %v477 = vunpack.c.l.b16 %v292
        %v478 = vunpack.c.h.b16 %v292
        %v479 = vunpack.c.l.b16 %v293
        %v480 = vunpack.c.h.b16 %v293
        %v481 = vunpack.c.l.b16 %v294
        %v482 = vunpack.c.h.b16 %v294
        %v483 = vunpack.c.l.b16 %v295
        %v484 = vunpack.c.h.b16 %v295
        %v485 = vunpack.c.l.b16 %v296
        %v486 = vunpack.c.h.b16 %v296
        %v487 = vunpack.c.l.b16 %v297
        %v488 = vunpack.c.h.b16 %v297
        %v489 = vunpack.c.l.b16 %v298
        %v490 = vunpack.c.h.b16 %v298
        %v491 = vunpack.c.l.b16 %v299
        %v492 = vunpack.c.h.b16 %v299
        %v493 = vunpack.c.l.b16 %v300
        %v494 = vunpack.c.h.b16 %v300
        %v495 = vunpack.c.l.b16 %v301
        %v496 = vunpack.c.h.b16 %v301
        %v497 = vunpack.c.l.b16 %v302
        %v498 = vunpack.c.h.b16 %v302
        %v499 = vunpack.c.l.b16 %v303
        %v500 = vunpack.c.h.b16 %v303
        %v501 = vunpack.c.l.b16 %v304
        %v502 = vunpack.c.h.b16 %v304
        %v503 = vunpack.c.l.b16 %v305
        %v504 = vunpack.c.h.b16 %v305
        %v505 = vunpack.c.l.b16 %v306
        %v506 = vunpack.c.h.b16 %v306
        %v507 = vunpack.c.l.b16 %v307
        %v508 = vunpack.c.h.b16 %v307
        %v509 = vunpack.c.l.b16 %v308
        %v510 = vunpack.c.h.b16 %v308
        %v511 = vunpack.c.l.b16 %v309
        %v512 = vunpack.c.h.b16 %v309
        %v513 = vunpack.c.l.b16 %v310
        %v514 = vunpack.c.h.b16 %v310
        %v515 = vunpack.c.l.b16 %v311
        %v516 = vunpack.c.h.b16 %v311
        %v517 = vunpack.c.l.b16 %v312
        %v518 = vunpack.c.h.b16 %v312
        %v519 = vunpack.c.l.b16 %v313
        %v520 = vunpack.c.h.b16 %v313
        %v521 = vunpack.c.l.b16 %v314
        %v522 = vunpack.c.h.b16 %v314
        %v523 = vunpack.c.l.b16 %v315
        %v524 = vunpack.c.h.b16 %v315
        %v525 = vunpack.c.l.b16 %v316
        %v526 = vunpack.c.h.b16 %v316
        %v527 = vunpack.c.l.b16 %v317
        %v528 = vunpack.c.h.b16 %v317
        %v529 = vunpack.c.l.b16 %v318
        %v530 = vunpack.c.h.b16 %v318
        %v531 = vunpack.c.l.b16 %v319
        %v532 = vunpack.c.h.b16 %v319
        %v533 = vunpack.c.l.b16 %v320
        %v534 = vunpack.c.h.b16 %v320
        %v535 = vunpack.c.l.b16 %v321
        %v536 = vunpack.c.h.b16 %v321
        %v537 = vunpack.c.l.b16 %v322
        %v538 = vunpack.c.h.b16 %v322
        %v539 = vpack.c.b16 %v407, %v395
        %v540 = vpack.c.b16 %v408, %v396
        %v541 = vpack.c.b16 %v409, %v397
        %v542 = vpack.c.b16 %v410, %v398
        %v543 = vpack.c.b16 %v411, %v399
        %v544 = vpack.c.b16 %v412, %v400
        %v545 = vpack.c.b16 %v413, %v401
        %v546 = vpack.c.b16 %v414, %v402
        %v547 = vpack.c.b16 %v415, %v403
        %v548 = vpack.c.b16 %v416, %v404
        %v549 = vpack.c.b16 %v417, %v405
        %v550 = vpack.c.b16 %v418, %v406
        %v551 = vpack.c.b16 %v431, %v419
        %v552 = vpack.c.b16 %v432, %v420
        %v553 = vpack.c.b16 %v433, %v421
        %v554 = vpack.c.b16 %v434, %v422
        %v555 = vpack.c.b16 %v435, %v423
        %v556 = vpack.c.b16 %v436, %v424
        %v557 = vpack.c.b16 %v437, %v425
        %v558 = vpack.c.b16 %v438, %v426
        %v559 = vpack.c.b16 %v439, %v427
        %v560 = vpack.c.b16 %v440, %v428
        %v561 = vpack.c.b16 %v441, %v429
        %v562 = vpack.c.b16 %v442, %v430
        %v563 = vpack.c.b16 %v455, %v443
        %v564 = vpack.c.b16 %v456, %v444
        %v565 = vpack.c.b16 %v457, %v445
        %v566 = vpack.c.b16 %v458, %v446
        %v567 = vpack.c.b16 %v459, %v447
        %v568 = vpack.c.b16 %v460, %v448
        %v569 = vpack.c.b16 %v461, %v449
        %v570 = vpack.c.b16 %v462, %v450
        %v571 = vpack.c.b16 %v463, %v451
        %v572 = vpack.c.b16 %v464, %v452
        %v573 = vpack.c.b16 %v465, %v453
        %v574 = vpack.c.b16 %v466, %v454
        %v575 = vpack.c.b16 %v479, %v467
        %v576 = vpack.c.b16 %v480, %v468
        %v577 = vpack.c.b16 %v481, %v469
        %v578 = vpack.c.b16 %v482, %v470
        %v579 = vpack.c.b16 %v483, %v471
        %v580 = vpack.c.b16 %v484, %v472
        %v581 = vpack.c.b16 %v485, %v473
        %v582 = vpack.c.b16 %v486, %v474
        %v583 = vpack.c.b16 %v487, %v475
        %v584 = vpack.c.b16 %v488, %v476
        %v585 = vpack.c.b16 %v489, %v477
        %v586 = vpack.c.b16 %v490, %v478
        %v587 = vpack.c.b16 %v503, %v491
        %v588 = vpack.c.b16 %v504, %v492
        %v589 = vpack.c.b16 %v505, %v493
        %v590 = vpack.c.b16 %v506, %v494
        %v591 = vpack.c.b16 %v507, %v495
        %v592 = vpack.c.b16 %v508, %v496
        %v593 = vpack.c.b16 %v509, %v497
        %v594 = vpack.c.b16 %v510, %v498
        %v595 = vpack.c.b16 %v511, %v499
        %v596 = vpack.c.b16 %v512, %v500
        %v597 = vpack.c.b16 %v513, %v501
        %v598 = vpack.c.b16 %v514, %v502
        %v599 = vpack.c.b16 %v527, %v515
        %v600 = vpack.c.b16 %v528, %v516
        %v601 = vpack.c.b16 %v529, %v517
        %v602 = vpack.c.b16 %v530, %v518
        %v603 = vpack.c.b16 %v531, %v519
        %v604 = vpack.c.b16 %v532, %v520
        %v605 = vpack.c.b16 %v533, %v521
        %v606 = vpack.c.b16 %v534, %v522
        %v607 = vpack.c.b16 %v535, %v523
        %v608 = vpack.c.b16 %v536, %v524
        %v609 = vpack.c.b16 %v537, %v525
        %v610 = vpack.c.b16 %v538, %v526
        %vm683 = vcmask 785408
        %v685 = vsel %vm683, %v250, 0
        %687 = vmatpush.bf16.msra.mxu0 0
        %688 = vmatpush.bf16.msra.mxu0 0
        %689 = vmatpush.bf16.msra.mxu0 %v599
        %690 = vmatpush.bf16.msra.mxu0 %v587
        %691 = vmatpush.bf16.msra.mxu0 %v575
        %692 = vmatpush.bf16.msra.mxu0 %v563
        %693 = vmatpush.bf16.msra.mxu0 %v551
        %694 = vmatpush.bf16.msra.mxu0 %v539
        %695 = vmatmul.bf16.gmra.mxu0 %v685
        %v696 = vpop.f32.mrf.mxu0
        %v697 = vadd.f32 0.0, %v696
        %v698 = vpop.f32.mrf.mxu0
        %699 = vdwg.mxu0
        %700 = vmatpush.bf16.msra.mxu0 0
        %701 = vmatpush.bf16.msra.mxu0 0
        %702 = vmatpush.bf16.msra.mxu0 %v600
        %703 = vmatpush.bf16.msra.mxu0 %v588
        %704 = vmatpush.bf16.msra.mxu0 %v576
        %705 = vmatpush.bf16.msra.mxu0 %v564
        %706 = vmatpush.bf16.msra.mxu0 %v552
        %707 = vmatpush.bf16.msra.mxu0 %v540
        %708 = vmatmul.bf16.gmra.mxu0 %v685
        %v709 = vpop.f32.mrf.mxu0
        %v710 = vadd.f32 0.0, %v709
        %v711 = vpop.f32.mrf.mxu0
        %712 = vdwg.mxu0
        %713 = vmatpush.bf16.msra.mxu0 0
        %714 = vmatpush.bf16.msra.mxu0 0
        %715 = vmatpush.bf16.msra.mxu0 %v601
        %716 = vmatpush.bf16.msra.mxu0 %v589
        %717 = vmatpush.bf16.msra.mxu0 %v577
        %718 = vmatpush.bf16.msra.mxu0 %v565
        %719 = vmatpush.bf16.msra.mxu0 %v553
        %720 = vmatpush.bf16.msra.mxu0 %v541
        %721 = vmatmul.bf16.gmra.mxu0 %v685
        %v722 = vpop.f32.mrf.mxu0
        %v723 = vadd.f32 0.0, %v722
        %v724 = vpop.f32.mrf.mxu0
        %725 = vdwg.mxu0
        %726 = vmatpush.bf16.msra.mxu0 0
        %727 = vmatpush.bf16.msra.mxu0 0
        %728 = vmatpush.bf16.msra.mxu0 %v602
        %729 = vmatpush.bf16.msra.mxu0 %v590
        %730 = vmatpush.bf16.msra.mxu0 %v578
        %731 = vmatpush.bf16.msra.mxu0 %v566
        %732 = vmatpush.bf16.msra.mxu0 %v554
        %733 = vmatpush.bf16.msra.mxu0 %v542
        %734 = vmatmul.bf16.gmra.mxu0 %v685
        %v735 = vpop.f32.mrf.mxu0
        %v736 = vadd.f32 0.0, %v735
        %v737 = vpop.f32.mrf.mxu0
        %738 = vdwg.mxu0
        %739 = vmatpush.bf16.msra.mxu0 0
        %740 = vmatpush.bf16.msra.mxu0 0
        %741 = vmatpush.bf16.msra.mxu0 %v603
        %742 = vmatpush.bf16.msra.mxu0 %v591
        %743 = vmatpush.bf16.msra.mxu0 %v579
        %744 = vmatpush.bf16.msra.mxu0 %v567
        %745 = vmatpush.bf16.msra.mxu0 %v555
        %746 = vmatpush.bf16.msra.mxu0 %v543
        %747 = vmatmul.bf16.gmra.mxu0 %v685
        %v748 = vpop.f32.mrf.mxu0
        %v749 = vadd.f32 0.0, %v748
        %v750 = vpop.f32.mrf.mxu0
        %751 = vdwg.mxu0
        %752 = vmatpush.bf16.msra.mxu0 0
        %753 = vmatpush.bf16.msra.mxu0 0
        %754 = vmatpush.bf16.msra.mxu0 %v604
        %755 = vmatpush.bf16.msra.mxu0 %v592
        %756 = vmatpush.bf16.msra.mxu0 %v580
        %757 = vmatpush.bf16.msra.mxu0 %v568
        %758 = vmatpush.bf16.msra.mxu0 %v556
        %759 = vmatpush.bf16.msra.mxu0 %v544
        %760 = vmatmul.bf16.gmra.mxu0 %v685
        %v761 = vpop.f32.mrf.mxu0
        %v762 = vadd.f32 0.0, %v761
        %v763 = vpop.f32.mrf.mxu0
        %764 = vdwg.mxu0
        %765 = vmatpush.bf16.msra.mxu0 0
        %766 = vmatpush.bf16.msra.mxu0 0
        %767 = vmatpush.bf16.msra.mxu0 %v605
        %768 = vmatpush.bf16.msra.mxu0 %v593
        %769 = vmatpush.bf16.msra.mxu0 %v581
        %770 = vmatpush.bf16.msra.mxu0 %v569
        %771 = vmatpush.bf16.msra.mxu0 %v557
        %772 = vmatpush.bf16.msra.mxu0 %v545
        %773 = vmatmul.bf16.gmra.mxu0 %v685
        %v774 = vpop.f32.mrf.mxu0
        %v775 = vadd.f32 0.0, %v774
        %v776 = vpop.f32.mrf.mxu0
        %777 = vdwg.mxu0
        %778 = vmatpush.bf16.msra.mxu0 0
        %779 = vmatpush.bf16.msra.mxu0 0
        %780 = vmatpush.bf16.msra.mxu0 %v606
        %781 = vmatpush.bf16.msra.mxu0 %v594
        %782 = vmatpush.bf16.msra.mxu0 %v582
        %783 = vmatpush.bf16.msra.mxu0 %v570
        %784 = vmatpush.bf16.msra.mxu0 %v558
        %785 = vmatpush.bf16.msra.mxu0 %v546
        %786 = vmatmul.bf16.gmra.mxu0 %v685
        %v787 = vpop.f32.mrf.mxu0
        %v788 = vadd.f32 0.0, %v787
        %v789 = vpop.f32.mrf.mxu0
        %790 = vdwg.mxu0
        %791 = vmatpush.bf16.msra.mxu0 0
        %792 = vmatpush.bf16.msra.mxu0 0
        %793 = vmatpush.bf16.msra.mxu0 %v607
        %794 = vmatpush.bf16.msra.mxu0 %v595
        %795 = vmatpush.bf16.msra.mxu0 %v583
        %796 = vmatpush.bf16.msra.mxu0 %v571
        %797 = vmatpush.bf16.msra.mxu0 %v559
        %798 = vmatpush.bf16.msra.mxu0 %v547
        %799 = vmatmul.bf16.gmra.mxu0 %v685
        %v800 = vpop.f32.mrf.mxu0
        %v801 = vadd.f32 0.0, %v800
        %v802 = vpop.f32.mrf.mxu0
        %803 = vdwg.mxu0
        %804 = vmatpush.bf16.msra.mxu0 0
        %805 = vmatpush.bf16.msra.mxu0 0
        %806 = vmatpush.bf16.msra.mxu0 %v608
        %807 = vmatpush.bf16.msra.mxu0 %v596
        %808 = vmatpush.bf16.msra.mxu0 %v584
        %809 = vmatpush.bf16.msra.mxu0 %v572
        %810 = vmatpush.bf16.msra.mxu0 %v560
        %811 = vmatpush.bf16.msra.mxu0 %v548
        %812 = vmatmul.bf16.gmra.mxu0 %v685
        %v813 = vpop.f32.mrf.mxu0
        %v814 = vadd.f32 0.0, %v813
        %v815 = vpop.f32.mrf.mxu0
        %816 = vdwg.mxu0
        %817 = vmatpush.bf16.msra.mxu0 0
        %818 = vmatpush.bf16.msra.mxu0 0
        %819 = vmatpush.bf16.msra.mxu0 %v609
        %820 = vmatpush.bf16.msra.mxu0 %v597
        %821 = vmatpush.bf16.msra.mxu0 %v585
        %822 = vmatpush.bf16.msra.mxu0 %v573
        %823 = vmatpush.bf16.msra.mxu0 %v561
        %824 = vmatpush.bf16.msra.mxu0 %v549
        %825 = vmatmul.bf16.gmra.mxu0 %v685
        %v826 = vpop.f32.mrf.mxu0
        %v827 = vadd.f32 0.0, %v826
        %v828 = vpop.f32.mrf.mxu0
        %829 = vdwg.mxu0
        %830 = vmatpush.bf16.msra.mxu0 0
        %831 = vmatpush.bf16.msra.mxu0 0
        %832 = vmatpush.bf16.msra.mxu0 %v610
        %833 = vmatpush.bf16.msra.mxu0 %v598
        %834 = vmatpush.bf16.msra.mxu0 %v586
        %835 = vmatpush.bf16.msra.mxu0 %v574
        %836 = vmatpush.bf16.msra.mxu0 %v562
        %837 = vmatpush.bf16.msra.mxu0 %v550
        %838 = vmatmul.bf16.gmra.mxu0 %v685
        %v839 = vpop.f32.mrf.mxu0
        %v840 = vadd.f32 0.0, %v839
        %v841 = vpop.f32.mrf.mxu0
        %842 = vdwg.mxu0
        %v843 = vpack.c.bf16 %v710, %v697
        %v844 = vpack.c.bf16 %v736, %v723
        %v845 = vpack.c.bf16 %v762, %v749
        %v846 = vpack.c.bf16 %v788, %v775
        %v847 = vpack.c.bf16 %v814, %v801
        %v848 = vpack.c.bf16 %v840, %v827
        %v849 = vunpack.c.l.bf16 %v843
        %v850 = vmul.f32 %v849, 0.125
        %v851 = vpack.c.bf16 %v850, %v850
        %vm852 = vcmask 523264
        %v854 = vsel %vm852, %v851, 0
        %v857 = vsel %vm852, %v845, 0
        %859 = vmatpush.bf16.xpose.msra.mxu0 0
        %860 = vmatpush.bf16.xpose.msra.mxu0 0
        %861 = vmatpush.bf16.xpose.msra.mxu0 0
        %862 = vmatpush.bf16.xpose.msra.mxu0 0
        %863 = vmatpush.bf16.xpose.msra.mxu0 0
        %864 = vmatpush.bf16.xpose.msra.mxu0 0
        %865 = vmatpush.bf16.xpose.msra.mxu0 0
        %866 = vmatpush.bf16.xpose.msra.mxu0 %v857
        %867 = vmatmul.bf16.gmra.mxu0 %v854
        %v868 = vpop.f32.mrf.mxu0
        %v869 = vadd.f32 0.0, %v868
        %v870 = vpop.f32.mrf.mxu0
        %871 = vdwg.mxu0
        %vm872 = vcmask 64512
        %v873 = vsel %vm872, %v869, -inf
        %874 = vmax.xlane.f32.xlu0 %v873
        %v875 = vpop.xlane.xlu0 %874
        %v876 = vsub.f32 %v869, %v875
        %v877 = vmul.f32 %v876, 1.442695
        %v878 = vpow.pop %v877
        %v879 = vsel %vm872, %v878, 0.0
        %880 = vadd.xlane.f32.xlu0 %v879
        %v881 = vpop.xlane.xlu0 %880
        %v882 = vrcp.pop %v881
        %v883 = vmul.f32 %v878, %v882
        %v884 = vpack.c.bf16 %v883, %v883
        %v886 = vsel %vm872, %v884, 0
        %vm888 = vcmask 1043456
        %v890 = vsel %vm888, %v847, 0
        %892 = vmatpush.bf16.msra.mxu0 0
        %893 = vmatpush.bf16.msra.mxu0 0
        %894 = vmatpush.bf16.msra.mxu0 0
        %895 = vmatpush.bf16.msra.mxu0 0
        %896 = vmatpush.bf16.msra.mxu0 0
        %897 = vmatpush.bf16.msra.mxu0 0
        %898 = vmatpush.bf16.msra.mxu0 0
        %899 = vmatpush.bf16.msra.mxu0 %v890
        %900 = vmatmul.bf16.gmra.mxu0 %v886
        %v901 = vpop.f32.mrf.mxu0
        %v902 = vadd.f32 0.0, %v901
        %v903 = vpop.f32.mrf.mxu0
        %904 = vdwg.mxu0
        %v905 = vpack.c.bf16 %v902, %v902
        %vm906 = vcmask 519168
        %907 = vst.msk [vmem:[#allocation2] sm:$0xf] %vm906, %v905
        %v909 = vunpack.c.l.b16 %v851
        %v910 = vpack.c.b16 %v909, %v909
        %911 = vrot.lane.b32.xlu0 %v910, 64
        %v912 = vpop.permute.xlu0 %911
        %v914 = vunpack.c.l.b16 %v845
        %v915 = vpack.c.b16 %v914, %v914
        %916 = vrot.lane.b32.xlu0 %v915, 64
        %v917 = vpop.permute.xlu0 %916
        %v919 = vsel %vm852, %v912, 0
        %v922 = vsel %vm852, %v917, 0
        %924 = vmatpush.bf16.xpose.msra.mxu0 0
        %925 = vmatpush.bf16.xpose.msra.mxu0 0
        %926 = vmatpush.bf16.xpose.msra.mxu0 0
        %927 = vmatpush.bf16.xpose.msra.mxu0 0
        %928 = vmatpush.bf16.xpose.msra.mxu0 0
        %929 = vmatpush.bf16.xpose.msra.mxu0 0
        %930 = vmatpush.bf16.xpose.msra.mxu0 0
        %931 = vmatpush.bf16.xpose.msra.mxu0 %v922
        %932 = vmatmul.bf16.gmra.mxu0 %v919
        %v933 = vpop.f32.mrf.mxu0
        %v934 = vadd.f32 0.0, %v933
        %v935 = vpop.f32.mrf.mxu0
        %936 = vdwg.mxu0
        %v937 = vsel %vm872, %v934, -inf
        %938 = vmax.xlane.f32.xlu0 %v937
        %v939 = vpop.xlane.xlu0 %938
        %v940 = vsub.f32 %v934, %v939
        %v941 = vmul.f32 %v940, 1.442695
        %v942 = vpow.pop %v941
        %v943 = vsel %vm872, %v942, 0.0
        %944 = vadd.xlane.f32.xlu0 %v943
        %v945 = vpop.xlane.xlu0 %944
        %v946 = vrcp.pop %v945
        %v947 = vmul.f32 %v942, %v946
        %v948 = vpack.c.bf16 %v947, %v947
        %v950 = vunpack.c.l.b16 %v847
        %v951 = vpack.c.b16 %v950, %v950
        %952 = vrot.lane.b32.xlu0 %v951, 64
        %v953 = vpop.permute.xlu0 %952
        %v955 = vsel %vm872, %v948, 0
        %v958 = vsel %vm888, %v953, 0
        %960 = vmatpush.bf16.msra.mxu0 0
        %961 = vmatpush.bf16.msra.mxu0 0
        %962 = vmatpush.bf16.msra.mxu0 0
        %963 = vmatpush.bf16.msra.mxu0 0
        %964 = vmatpush.bf16.msra.mxu0 0
        %965 = vmatpush.bf16.msra.mxu0 0
        %966 = vmatpush.bf16.msra.mxu0 0
        %967 = vmatpush.bf16.msra.mxu0 %v958
        %968 = vmatmul.bf16.gmra.mxu0 %v955
        %v969 = vpop.f32.mrf.mxu0
        %v970 = vadd.f32 0.0, %v969
        %v971 = vpop.f32.mrf.mxu0
        %972 = vdwg.mxu0
        %v973 = vpack.c.bf16 %v970, %v970
        %975 = vrot.lane.b32.xlu0 %v973, 64
        %v976 = vpop.permute.xlu0 %975
        %vm978 = vcmask 1043968
        %979 = vst.msk [vmem:[#allocation2] sm:$0xf] %vm978, %v976
        %v981 = vrot.slane %v843, 4
        %v983 = vunpack.c.l.bf16 %v981
        %v984 = vmul.f32 %v983, 0.125
        %v985 = vpack.c.bf16 %v984, %v984
        %v986 = vrot.slane %v845, 4
        %v988 = vsel %vm852, %v985, 0
        %v991 = vsel %vm852, %v986, 0
        %993 = vmatpush.bf16.xpose.msra.mxu0 0
        %994 = vmatpush.bf16.xpose.msra.mxu0 0
        %995 = vmatpush.bf16.xpose.msra.mxu0 0
        %996 = vmatpush.bf16.xpose.msra.mxu0 0
        %997 = vmatpush.bf16.xpose.msra.mxu0 0
        %998 = vmatpush.bf16.xpose.msra.mxu0 0
        %999 = vmatpush.bf16.xpose.msra.mxu0 0
        %1000 = vmatpush.bf16.xpose.msra.mxu0 %v991
        %1001 = vmatmul.bf16.gmra.mxu0 %v988
        %v1002 = vpop.f32.mrf.mxu0
        %v1003 = vadd.f32 0.0, %v1002
        %v1004 = vpop.f32.mrf.mxu0
        %1005 = vdwg.mxu0
        %v1006 = vsel %vm872, %v1003, -inf
        %1007 = vmax.xlane.f32.xlu0 %v1006
        %v1008 = vpop.xlane.xlu0 %1007
        %v1009 = vsub.f32 %v1003, %v1008
        %v1010 = vmul.f32 %v1009, 1.442695
        %v1011 = vpow.pop %v1010
        %v1012 = vsel %vm872, %v1011, 0.0
        %1013 = vadd.xlane.f32.xlu0 %v1012
        %v1014 = vpop.xlane.xlu0 %1013
        %v1015 = vrcp.pop %v1014
        %v1016 = vmul.f32 %v1011, %v1015
        %v1017 = vpack.c.bf16 %v1016, %v1016
        %v1018 = vrot.slane %v847, 4
        %v1020 = vsel %vm872, %v1017, 0
        %v1023 = vsel %vm888, %v1018, 0
        %1025 = vmatpush.bf16.msra.mxu0 0
        %1026 = vmatpush.bf16.msra.mxu0 0
        %1027 = vmatpush.bf16.msra.mxu0 0
        %1028 = vmatpush.bf16.msra.mxu0 0
        %1029 = vmatpush.bf16.msra.mxu0 0
        %1030 = vmatpush.bf16.msra.mxu0 0
        %1031 = vmatpush.bf16.msra.mxu0 0
        %1032 = vmatpush.bf16.msra.mxu0 %v1023
        %1033 = vmatmul.bf16.gmra.mxu0 %v1020
        %v1034 = vpop.f32.mrf.mxu0
        %v1035 = vadd.f32 0.0, %v1034
        %v1036 = vpop.f32.mrf.mxu0
        %1037 = vdwg.mxu0
        %v1038 = vpack.c.bf16 %v1035, %v1035
        %1039 = vst.msk [vmem:[#allocation2 + $0x4] sm:$0xf] %vm906, %v1038
        %1040 = vrot.lane.b32.xlu0 %v843, 64
        %v1041 = vpop.permute.xlu0 %1040
        %v1042 = vrot.slane %v1041, 4
        %v1044 = vunpack.c.l.bf16 %v1042
        %v1045 = vmul.f32 %v1044, 0.125
        %v1046 = vpack.c.bf16 %v1045, %v1045
        %1047 = vrot.lane.b32.xlu0 %v845, 64
        %v1048 = vpop.permute.xlu0 %1047
        %v1049 = vrot.slane %v1048, 4
        %v1051 = vsel %vm852, %v1046, 0
        %v1054 = vsel %vm852, %v1049, 0
        %1056 = vmatpush.bf16.xpose.msra.mxu0 0
        %1057 = vmatpush.bf16.xpose.msra.mxu0 0
        %1058 = vmatpush.bf16.xpose.msra.mxu0 0
        %1059 = vmatpush.bf16.xpose.msra.mxu0 0
        %1060 = vmatpush.bf16.xpose.msra.mxu0 0
        %1061 = vmatpush.bf16.xpose.msra.mxu0 0
        %1062 = vmatpush.bf16.xpose.msra.mxu0 0
        %1063 = vmatpush.bf16.xpose.msra.mxu0 %v1054
        %1064 = vmatmul.bf16.gmra.mxu0 %v1051
        %v1065 = vpop.f32.mrf.mxu0
        %v1066 = vadd.f32 0.0, %v1065
        %v1067 = vpop.f32.mrf.mxu0
        %1068 = vdwg.mxu0
        %v1069 = vsel %vm872, %v1066, -inf
        %1070 = vmax.xlane.f32.xlu0 %v1069
        %v1071 = vpop.xlane.xlu0 %1070
        %v1072 = vsub.f32 %v1066, %v1071
        %v1073 = vmul.f32 %v1072, 1.442695
        %v1074 = vpow.pop %v1073
        %v1075 = vsel %vm872, %v1074, 0.0
        %1076 = vadd.xlane.f32.xlu0 %v1075
        %v1077 = vpop.xlane.xlu0 %1076
        %v1078 = vrcp.pop %v1077
        %v1079 = vmul.f32 %v1074, %v1078
        %v1080 = vpack.c.bf16 %v1079, %v1079
        %1081 = vrot.lane.b32.xlu0 %v847, 64
        %v1082 = vpop.permute.xlu0 %1081
        %v1083 = vrot.slane %v1082, 4
        %v1085 = vsel %vm872, %v1080, 0
        %v1088 = vsel %vm888, %v1083, 0
        %1090 = vmatpush.bf16.msra.mxu0 0
        %1091 = vmatpush.bf16.msra.mxu0 0
        %1092 = vmatpush.bf16.msra.mxu0 0
        %1093 = vmatpush.bf16.msra.mxu0 0
        %1094 = vmatpush.bf16.msra.mxu0 0
        %1095 = vmatpush.bf16.msra.mxu0 0
        %1096 = vmatpush.bf16.msra.mxu0 0
        %1097 = vmatpush.bf16.msra.mxu0 %v1088
        %1098 = vmatmul.bf16.gmra.mxu0 %v1085
        %v1099 = vpop.f32.mrf.mxu0
        %v1100 = vadd.f32 0.0, %v1099
        %v1101 = vpop.f32.mrf.mxu0
        %1102 = vdwg.mxu0
        %v1103 = vpack.c.bf16 %v1100, %v1100
        %1105 = vrot.lane.b32.xlu0 %v1103, 64
        %v1106 = vpop.permute.xlu0 %1105
        %1108 = vst.msk [vmem:[#allocation2 + $0x4] sm:$0xf] %vm978, %v1106
        %v1109 = vunpack.c.l.bf16 %v844
        %v1110 = vmul.f32 %v1109, 0.125
        %v1111 = vpack.c.bf16 %v1110, %v1110
        %v1113 = vsel %vm852, %v1111, 0
        %v1116 = vsel %vm852, %v846, 0
        %1118 = vmatpush.bf16.xpose.msra.mxu0 0
        %1119 = vmatpush.bf16.xpose.msra.mxu0 0
        %1120 = vmatpush.bf16.xpose.msra.mxu0 0
        %1121 = vmatpush.bf16.xpose.msra.mxu0 0
        %1122 = vmatpush.bf16.xpose.msra.mxu0 0
        %1123 = vmatpush.bf16.xpose.msra.mxu0 0
        %1124 = vmatpush.bf16.xpose.msra.mxu0 0
        %1125 = vmatpush.bf16.xpose.msra.mxu0 %v1116
        %1126 = vmatmul.bf16.gmra.mxu0 %v1113
        %v1127 = vpop.f32.mrf.mxu0
        %v1128 = vadd.f32 0.0, %v1127
        %v1129 = vpop.f32.mrf.mxu0
        %1130 = vdwg.mxu0
        %v1131 = vsel %vm872, %v1128, -inf
        %1132 = vmax.xlane.f32.xlu0 %v1131
        %v1133 = vpop.xlane.xlu0 %1132
        %v1134 = vsub.f32 %v1128, %v1133
        %v1135 = vmul.f32 %v1134, 1.442695
        %v1136 = vpow.pop %v1135
        %v1137 = vsel %vm872, %v1136, 0.0
        %1138 = vadd.xlane.f32.xlu0 %v1137
        %v1139 = vpop.xlane.xlu0 %1138
        %v1140 = vrcp.pop %v1139
        %v1141 = vmul.f32 %v1136, %v1140
        %v1142 = vpack.c.bf16 %v1141, %v1141
        %v1144 = vsel %vm872, %v1142, 0
        %v1147 = vsel %vm888, %v848, 0
        %1149 = vmatpush.bf16.msra.mxu0 0
        %1150 = vmatpush.bf16.msra.mxu0 0
        %1151 = vmatpush.bf16.msra.mxu0 0
        %1152 = vmatpush.bf16.msra.mxu0 0
        %1153 = vmatpush.bf16.msra.mxu0 0
        %1154 = vmatpush.bf16.msra.mxu0 0
        %1155 = vmatpush.bf16.msra.mxu0 0
        %1156 = vmatpush.bf16.msra.mxu0 %v1147
        %1157 = vmatmul.bf16.gmra.mxu0 %v1144
        %v1158 = vpop.f32.mrf.mxu0
        %v1159 = vadd.f32 0.0, %v1158
        %v1160 = vpop.f32.mrf.mxu0
        %1161 = vdwg.mxu0
        %v1162 = vpack.c.bf16 %v1159, %v1159
        %1163 = vst.msk [vmem:[#allocation2 + $0x8] sm:$0xf] %vm906, %v1162
        %v1165 = vunpack.c.l.b16 %v1111
        %v1166 = vpack.c.b16 %v1165, %v1165
        %1167 = vrot.lane.b32.xlu0 %v1166, 64
        %v1168 = vpop.permute.xlu0 %1167
        %v1170 = vunpack.c.l.b16 %v846
        %v1171 = vpack.c.b16 %v1170, %v1170
        %1172 = vrot.lane.b32.xlu0 %v1171, 64
        %v1173 = vpop.permute.xlu0 %1172
        %v1175 = vsel %vm852, %v1168, 0
        %v1178 = vsel %vm852, %v1173, 0
        %1180 = vmatpush.bf16.xpose.msra.mxu0 0
        %1181 = vmatpush.bf16.xpose.msra.mxu0 0
        %1182 = vmatpush.bf16.xpose.msra.mxu0 0
        %1183 = vmatpush.bf16.xpose.msra.mxu0 0
        %1184 = vmatpush.bf16.xpose.msra.mxu0 0
        %1185 = vmatpush.bf16.xpose.msra.mxu0 0
        %1186 = vmatpush.bf16.xpose.msra.mxu0 0
        %1187 = vmatpush.bf16.xpose.msra.mxu0 %v1178
        %1188 = vmatmul.bf16.gmra.mxu0 %v1175
        %v1189 = vpop.f32.mrf.mxu0
        %v1190 = vadd.f32 0.0, %v1189
        %v1191 = vpop.f32.mrf.mxu0
        %1192 = vdwg.mxu0
        %v1193 = vsel %vm872, %v1190, -inf
        %1194 = vmax.xlane.f32.xlu0 %v1193
        %v1195 = vpop.xlane.xlu0 %1194
        %v1196 = vsub.f32 %v1190, %v1195
        %v1197 = vmul.f32 %v1196, 1.442695
        %v1198 = vpow.pop %v1197
        %v1199 = vsel %vm872, %v1198, 0.0
        %1200 = vadd.xlane.f32.xlu0 %v1199
        %v1201 = vpop.xlane.xlu0 %1200
        %v1202 = vrcp.pop %v1201
        %v1203 = vmul.f32 %v1198, %v1202
        %v1204 = vpack.c.bf16 %v1203, %v1203
        %v1206 = vunpack.c.l.b16 %v848
        %v1207 = vpack.c.b16 %v1206, %v1206
        %1208 = vrot.lane.b32.xlu0 %v1207, 64
        %v1209 = vpop.permute.xlu0 %1208
        %v1211 = vsel %vm872, %v1204, 0
        %v1214 = vsel %vm888, %v1209, 0
        %1216 = vmatpush.bf16.msra.mxu0 0
        %1217 = vmatpush.bf16.msra.mxu0 0
        %1218 = vmatpush.bf16.msra.mxu0 0
        %1219 = vmatpush.bf16.msra.mxu0 0
        %1220 = vmatpush.bf16.msra.mxu0 0
        %1221 = vmatpush.bf16.msra.mxu0 0
        %1222 = vmatpush.bf16.msra.mxu0 0
        %1223 = vmatpush.bf16.msra.mxu0 %v1214
        %1224 = vmatmul.bf16.gmra.mxu0 %v1211
        %v1225 = vpop.f32.mrf.mxu0
        %v1226 = vadd.f32 0.0, %v1225
        %v1227 = vpop.f32.mrf.mxu0
        %1228 = vdwg.mxu0
        %v1229 = vpack.c.bf16 %v1226, %v1226
        %1231 = vrot.lane.b32.xlu0 %v1229, 64
        %v1232 = vpop.permute.xlu0 %1231
        %1234 = vst.msk [vmem:[#allocation2 + $0x8] sm:$0xf] %vm978, %v1232
        %v1236 = vrot.slane %v844, 4
        %v1238 = vunpack.c.l.bf16 %v1236
        %v1239 = vmul.f32 %v1238, 0.125
        %v1240 = vpack.c.bf16 %v1239, %v1239
        %v1241 = vrot.slane %v846, 4
        %v1243 = vsel %vm852, %v1240, 0
        %v1246 = vsel %vm852, %v1241, 0
        %1248 = vmatpush.bf16.xpose.msra.mxu0 0
        %1249 = vmatpush.bf16.xpose.msra.mxu0 0
        %1250 = vmatpush.bf16.xpose.msra.mxu0 0
        %1251 = vmatpush.bf16.xpose.msra.mxu0 0
        %1252 = vmatpush.bf16.xpose.msra.mxu0 0
        %1253 = vmatpush.bf16.xpose.msra.mxu0 0
        %1254 = vmatpush.bf16.xpose.msra.mxu0 0
        %1255 = vmatpush.bf16.xpose.msra.mxu0 %v1246
        %1256 = vmatmul.bf16.gmra.mxu0 %v1243
        %v1257 = vpop.f32.mrf.mxu0
        %v1258 = vadd.f32 0.0, %v1257
        %v1259 = vpop.f32.mrf.mxu0
        %1260 = vdwg.mxu0
        %v1261 = vsel %vm872, %v1258, -inf
        %1262 = vmax.xlane.f32.xlu0 %v1261
        %v1263 = vpop.xlane.xlu0 %1262
        %v1264 = vsub.f32 %v1258, %v1263
        %v1265 = vmul.f32 %v1264, 1.442695
        %v1266 = vpow.pop %v1265
        %v1267 = vsel %vm872, %v1266, 0.0
        %1268 = vadd.xlane.f32.xlu0 %v1267
        %v1269 = vpop.xlane.xlu0 %1268
        %v1270 = vrcp.pop %v1269
        %v1271 = vmul.f32 %v1266, %v1270
        %v1272 = vpack.c.bf16 %v1271, %v1271
        %v1273 = vrot.slane %v848, 4
        %v1275 = vsel %vm872, %v1272, 0
        %v1278 = vsel %vm888, %v1273, 0
        %1280 = vmatpush.bf16.msra.mxu0 0
        %1281 = vmatpush.bf16.msra.mxu0 0
        %1282 = vmatpush.bf16.msra.mxu0 0
        %1283 = vmatpush.bf16.msra.mxu0 0
        %1284 = vmatpush.bf16.msra.mxu0 0
        %1285 = vmatpush.bf16.msra.mxu0 0
        %1286 = vmatpush.bf16.msra.mxu0 0
        %1287 = vmatpush.bf16.msra.mxu0 %v1278
        %1288 = vmatmul.bf16.gmra.mxu0 %v1275
        %v1289 = vpop.f32.mrf.mxu0
        %v1290 = vadd.f32 0.0, %v1289
        %v1291 = vpop.f32.mrf.mxu0
        %1292 = vdwg.mxu0
        %v1293 = vpack.c.bf16 %v1290, %v1290
        %1294 = vst.msk [vmem:[#allocation2 + $0xc] sm:$0xf] %vm906, %v1293
        %1295 = vrot.lane.b32.xlu0 %v844, 64
        %v1296 = vpop.permute.xlu0 %1295
        %v1297 = vrot.slane %v1296, 4
        %v1299 = vunpack.c.l.bf16 %v1297
        %v1300 = vmul.f32 %v1299, 0.125
        %v1301 = vpack.c.bf16 %v1300, %v1300
        %1302 = vrot.lane.b32.xlu0 %v846, 64
        %v1303 = vpop.permute.xlu0 %1302
        %v1304 = vrot.slane %v1303, 4
        %v1306 = vsel %vm852, %v1301, 0
        %v1309 = vsel %vm852, %v1304, 0
        %1311 = vmatpush.bf16.xpose.msra.mxu0 0
        %1312 = vmatpush.bf16.xpose.msra.mxu0 0
        %1313 = vmatpush.bf16.xpose.msra.mxu0 0
        %1314 = vmatpush.bf16.xpose.msra.mxu0 0
        %1315 = vmatpush.bf16.xpose.msra.mxu0 0
        %1316 = vmatpush.bf16.xpose.msra.mxu0 0
        %1317 = vmatpush.bf16.xpose.msra.mxu0 0
        %1318 = vmatpush.bf16.xpose.msra.mxu0 %v1309
        %1319 = vmatmul.bf16.gmra.mxu0 %v1306
        %v1320 = vpop.f32.mrf.mxu0
        %v1321 = vadd.f32 0.0, %v1320
        %v1322 = vpop.f32.mrf.mxu0
        %1323 = vdwg.mxu0
        %v1324 = vsel %vm872, %v1321, -inf
        %1325 = vmax.xlane.f32.xlu0 %v1324
        %v1326 = vpop.xlane.xlu0 %1325
        %v1327 = vsub.f32 %v1321, %v1326
        %v1328 = vmul.f32 %v1327, 1.442695
        %v1329 = vpow.pop %v1328
        %v1330 = vsel %vm872, %v1329, 0.0
        %1331 = vadd.xlane.f32.xlu0 %v1330
        %v1332 = vpop.xlane.xlu0 %1331
        %v1333 = vrcp.pop %v1332
        %v1334 = vmul.f32 %v1329, %v1333
        %v1335 = vpack.c.bf16 %v1334, %v1334
        %1336 = vrot.lane.b32.xlu0 %v848, 64
        %v1337 = vpop.permute.xlu0 %1336
        %v1338 = vrot.slane %v1337, 4
        %v1340 = vsel %vm872, %v1335, 0
        %v1343 = vsel %vm888, %v1338, 0
        %1345 = vmatpush.bf16.msra.mxu0 0
        %1346 = vmatpush.bf16.msra.mxu0 0
        %1347 = vmatpush.bf16.msra.mxu0 0
        %1348 = vmatpush.bf16.msra.mxu0 0
        %1349 = vmatpush.bf16.msra.mxu0 0
        %1350 = vmatpush.bf16.msra.mxu0 0
        %1351 = vmatpush.bf16.msra.mxu0 0
        %1352 = vmatpush.bf16.msra.mxu0 %v1343
        %1353 = vmatmul.bf16.gmra.mxu0 %v1340
        %v1354 = vpop.f32.mrf.mxu0
        %v1355 = vadd.f32 0.0, %v1354
        %v1356 = vpop.f32.mrf.mxu0
        %1357 = vdwg.mxu0
        %v1358 = vpack.c.bf16 %v1355, %v1355
        %1360 = vrot.lane.b32.xlu0 %v1358, 64
        %v1361 = vpop.permute.xlu0 %1360
        %1363 = vst.msk [vmem:[#allocation2 + $0xc] sm:$0xf] %vm978, %v1361
        %v1364 = vld [vmem:[#allocation2] sm:$0xff]
        %v1365 = vld [vmem:[#allocation2 + $0x8] sm:$0xff]
        %v1366 = vld [vmem:[#allocation8] sm:$0xf]
        %v1367 = vld [vmem:[#allocation8 + $0x4] sm:$0xf]
        %v1368 = vld [vmem:[#allocation8 + $0x8] sm:$0xf]
        %v1369 = vld [vmem:[#allocation8 + $0xc] sm:$0xf]
        %v1370 = vld [vmem:[#allocation8 + $0x10] sm:$0xf]
        %v1371 = vld [vmem:[#allocation8 + $0x14] sm:$0xf]
        %v1372 = vld [vmem:[#allocation8 + $0x18] sm:$0xf]
        %v1373 = vld [vmem:[#allocation8 + $0x1c] sm:$0xf]
        %v1374 = vld [vmem:[#allocation8 + $0x20] sm:$0xf]
        %v1375 = vld [vmem:[#allocation8 + $0x24] sm:$0xf]
        %v1376 = vld [vmem:[#allocation8 + $0x28] sm:$0xf]
        %v1377 = vld [vmem:[#allocation8 + $0x2c] sm:$0xf]
        %v1378 = vld [vmem:[#allocation8 + $0x30] sm:$0xf]
        %v1379 = vld [vmem:[#allocation8 + $0x34] sm:$0xf]
        %v1380 = vld [vmem:[#allocation8 + $0x38] sm:$0xf]
        %v1381 = vld [vmem:[#allocation8 + $0x3c] sm:$0xf]
        %v1382 = vld [vmem:[#allocation8 + $0x40] sm:$0xf]
        %v1383 = vld [vmem:[#allocation8 + $0x44] sm:$0xf]
        %v1384 = vld [vmem:[#allocation8 + $0x48] sm:$0xf]
        %v1385 = vld [vmem:[#allocation8 + $0x4c] sm:$0xf]
        %v1386 = vld [vmem:[#allocation8 + $0x50] sm:$0xf]
        %v1387 = vld [vmem:[#allocation8 + $0x54] sm:$0xf]
        %v1388 = vld [vmem:[#allocation8 + $0x58] sm:$0xf]
        %v1389 = vld [vmem:[#allocation8 + $0x5c] sm:$0xf]
        %v1390 = vld [vmem:[#allocation8 + $0x60] sm:$0xf]
        %v1391 = vld [vmem:[#allocation8 + $0x64] sm:$0xf]
        %v1392 = vld [vmem:[#allocation8 + $0x68] sm:$0xf]
        %v1393 = vld [vmem:[#allocation8 + $0x6c] sm:$0xf]
        %v1394 = vld [vmem:[#allocation8 + $0x70] sm:$0xf]
        %v1395 = vld [vmem:[#allocation8 + $0x74] sm:$0xf]
        %v1396 = vld [vmem:[#allocation8 + $0x78] sm:$0xf]
        %v1397 = vld [vmem:[#allocation8 + $0x7c] sm:$0xf]
        %v1398 = vld [vmem:[#allocation8 + $0x80] sm:$0xf]
        %v1399 = vld [vmem:[#allocation8 + $0x84] sm:$0xf]
        %v1400 = vld [vmem:[#allocation8 + $0x88] sm:$0xf]
        %v1401 = vld [vmem:[#allocation8 + $0x8c] sm:$0xf]
        %v1402 = vld [vmem:[#allocation8 + $0x90] sm:$0xf]
        %v1403 = vld [vmem:[#allocation8 + $0x94] sm:$0xf]
        %v1404 = vld [vmem:[#allocation8 + $0x98] sm:$0xf]
        %v1405 = vld [vmem:[#allocation8 + $0x9c] sm:$0xf]
        %v1406 = vld [vmem:[#allocation8 + $0xa0] sm:$0xf]
        %v1407 = vld [vmem:[#allocation8 + $0xa4] sm:$0xf]
        %v1408 = vld [vmem:[#allocation8 + $0xa8] sm:$0xf]
        %v1409 = vld [vmem:[#allocation8 + $0xac] sm:$0xf]
        %v1410 = vld [vmem:[#allocation8 + $0xb0] sm:$0xf]
        %v1411 = vld [vmem:[#allocation8 + $0xb4] sm:$0xf]
        %v1412 = vld [vmem:[#allocation8 + $0xb8] sm:$0xf]
        %v1413 = vld [vmem:[#allocation8 + $0xbc] sm:$0xf]
        %v1414 = vld [vmem:[#allocation8 + $0xc0] sm:$0xf]
        %v1415 = vld [vmem:[#allocation8 + $0xc4] sm:$0xf]
        %v1416 = vld [vmem:[#allocation8 + $0xc8] sm:$0xf]
        %v1417 = vld [vmem:[#allocation8 + $0xcc] sm:$0xf]
        %v1418 = vld [vmem:[#allocation8 + $0xd0] sm:$0xf]
        %v1419 = vld [vmem:[#allocation8 + $0xd4] sm:$0xf]
        %v1420 = vld [vmem:[#allocation8 + $0xd8] sm:$0xf]
        %v1421 = vld [vmem:[#allocation8 + $0xdc] sm:$0xf]
        %v1422 = vld [vmem:[#allocation8 + $0xe0] sm:$0xf]
        %v1423 = vld [vmem:[#allocation8 + $0xe4] sm:$0xf]
        %v1424 = vld [vmem:[#allocation8 + $0xe8] sm:$0xf]
        %v1425 = vld [vmem:[#allocation8 + $0xec] sm:$0xf]
        %v1426 = vld [vmem:[#allocation8 + $0xf0] sm:$0xf]
        %v1427 = vld [vmem:[#allocation8 + $0xf4] sm:$0xf]
        %v1428 = vld [vmem:[#allocation8 + $0xf8] sm:$0xf]
        %v1429 = vld [vmem:[#allocation8 + $0xfc] sm:$0xf]
        %v1430 = vld [vmem:[%s3] sm:$0x1]
        %v1432 = vperm.slane %v1430, 0
        %v1436 = vunpack.c.l.b16 %v1364
        %v1437 = vunpack.c.h.b16 %v1364
        %v1438 = vunpack.c.l.b16 %v1365
        %v1439 = vunpack.c.h.b16 %v1365
        %v1440 = vpack.c.b16 %v1436, %v1436
        %v1441 = vpack.c.b16 %v1437, %v1437
        %v1442 = vpack.c.b16 %v1438, %v1438
        %v1443 = vpack.c.b16 %v1439, %v1439
        %v1512 = vunpack.c.l.b16 %v1366
        %v1513 = vunpack.c.l.b16 %v1367
        %v1514 = vunpack.c.l.b16 %v1368
        %v1515 = vunpack.c.l.b16 %v1369
        %v1516 = vunpack.c.l.b16 %v1370
        %v1517 = vunpack.c.l.b16 %v1371
        %v1518 = vunpack.c.l.b16 %v1372
        %v1519 = vunpack.c.l.b16 %v1373
        %v1520 = vunpack.c.l.b16 %v1374
        %v1521 = vunpack.c.l.b16 %v1375
        %v1522 = vunpack.c.l.b16 %v1376
        %v1523 = vunpack.c.l.b16 %v1377
        %v1524 = vunpack.c.l.b16 %v1378
        %v1525 = vunpack.c.l.b16 %v1379
        %v1526 = vunpack.c.l.b16 %v1380
        %v1527 = vunpack.c.l.b16 %v1381
        %v1528 = vunpack.c.l.b16 %v1382
        %v1529 = vunpack.c.l.b16 %v1383
        %v1530 = vunpack.c.l.b16 %v1384
        %v1531 = vunpack.c.l.b16 %v1385
        %v1532 = vunpack.c.l.b16 %v1386
        %v1533 = vunpack.c.l.b16 %v1387
        %v1534 = vunpack.c.l.b16 %v1388
        %v1535 = vunpack.c.l.b16 %v1389
        %v1536 = vunpack.c.l.b16 %v1390
        %v1537 = vunpack.c.l.b16 %v1391
        %v1538 = vunpack.c.l.b16 %v1392
        %v1539 = vunpack.c.l.b16 %v1393
        %v1540 = vunpack.c.l.b16 %v1394
        %v1541 = vunpack.c.l.b16 %v1395
        %v1542 = vunpack.c.l.b16 %v1396
        %v1543 = vunpack.c.l.b16 %v1397
        %v1544 = vunpack.c.l.b16 %v1398
        %v1545 = vunpack.c.l.b16 %v1399
        %v1546 = vunpack.c.l.b16 %v1400
        %v1547 = vunpack.c.l.b16 %v1401
        %v1548 = vunpack.c.l.b16 %v1402
        %v1549 = vunpack.c.l.b16 %v1403
        %v1550 = vunpack.c.l.b16 %v1404
        %v1551 = vunpack.c.l.b16 %v1405
        %v1552 = vunpack.c.l.b16 %v1406
        %v1553 = vunpack.c.l.b16 %v1407
        %v1554 = vunpack.c.l.b16 %v1408
        %v1555 = vunpack.c.l.b16 %v1409
        %v1556 = vunpack.c.l.b16 %v1410
        %v1557 = vunpack.c.l.b16 %v1411
        %v1558 = vunpack.c.l.b16 %v1412
        %v1559 = vunpack.c.l.b16 %v1413
        %v1560 = vunpack.c.l.b16 %v1414
        %v1561 = vunpack.c.l.b16 %v1415
        %v1562 = vunpack.c.l.b16 %v1416
        %v1563 = vunpack.c.l.b16 %v1417
        %v1564 = vunpack.c.l.b16 %v1418
        %v1565 = vunpack.c.l.b16 %v1419
        %v1566 = vunpack.c.l.b16 %v1420
        %v1567 = vunpack.c.l.b16 %v1421
        %v1568 = vunpack.c.l.b16 %v1422
        %v1569 = vunpack.c.l.b16 %v1423
        %v1570 = vunpack.c.l.b16 %v1424
        %v1571 = vunpack.c.l.b16 %v1425
        %v1572 = vunpack.c.l.b16 %v1426
        %v1573 = vunpack.c.l.b16 %v1427
        %v1574 = vunpack.c.l.b16 %v1428
        %v1575 = vunpack.c.l.b16 %v1429
        %v1576 = vpack.c.b16 %v1513, %v1512
        %v1577 = vpack.c.b16 %v1515, %v1514
        %v1578 = vpack.c.b16 %v1517, %v1516
        %v1579 = vpack.c.b16 %v1519, %v1518
        %v1580 = vpack.c.b16 %v1521, %v1520
        %v1581 = vpack.c.b16 %v1523, %v1522
        %v1582 = vpack.c.b16 %v1525, %v1524
        %v1583 = vpack.c.b16 %v1527, %v1526
        %v1584 = vpack.c.b16 %v1529, %v1528
        %v1585 = vpack.c.b16 %v1531, %v1530
        %v1586 = vpack.c.b16 %v1533, %v1532
        %v1587 = vpack.c.b16 %v1535, %v1534
        %v1588 = vpack.c.b16 %v1537, %v1536
        %v1589 = vpack.c.b16 %v1539, %v1538
        %v1590 = vpack.c.b16 %v1541, %v1540
        %v1591 = vpack.c.b16 %v1543, %v1542
        %v1592 = vpack.c.b16 %v1545, %v1544
        %v1593 = vpack.c.b16 %v1547, %v1546
        %v1594 = vpack.c.b16 %v1549, %v1548
        %v1595 = vpack.c.b16 %v1551, %v1550
        %v1596 = vpack.c.b16 %v1553, %v1552
        %v1597 = vpack.c.b16 %v1555, %v1554
        %v1598 = vpack.c.b16 %v1557, %v1556
        %v1599 = vpack.c.b16 %v1559, %v1558
        %v1600 = vpack.c.b16 %v1561, %v1560
        %v1601 = vpack.c.b16 %v1563, %v1562
        %v1602 = vpack.c.b16 %v1565, %v1564
        %v1603 = vpack.c.b16 %v1567, %v1566
        %v1604 = vpack.c.b16 %v1569, %v1568
        %v1605 = vpack.c.b16 %v1571, %v1570
        %v1606 = vpack.c.b16 %v1573, %v1572
        %v1607 = vpack.c.b16 %v1575, %v1574
        %1640 = vmatpush.bf16.msra.mxu0 %v1583
        %1641 = vmatpush.bf16.msra.mxu0 %v1582
        %1642 = vmatpush.bf16.msra.mxu0 %v1581
        %1643 = vmatpush.bf16.msra.mxu0 %v1580
        %1644 = vmatpush.bf16.msra.mxu0 %v1579
        %1645 = vmatpush.bf16.msra.mxu0 %v1578
        %1646 = vmatpush.bf16.msra.mxu0 %v1577
        %1647 = vmatpush.bf16.msra.mxu0 %v1576
        %1648 = vmatmul.bf16.gmra.mxu0 %v1440
        %v1649 = vpop.f32.mrf.mxu0
        %v1650 = vadd.f32 %v1432, %v1649
        %v1651 = vpop.f32.mrf.mxu0
        %1652 = vdwg.mxu0
        %1653 = vmatpush.bf16.msra.mxu0 %v1591
        %1654 = vmatpush.bf16.msra.mxu0 %v1590
        %1655 = vmatpush.bf16.msra.mxu0 %v1589
        %1656 = vmatpush.bf16.msra.mxu0 %v1588
        %1657 = vmatpush.bf16.msra.mxu0 %v1587
        %1658 = vmatpush.bf16.msra.mxu0 %v1586
        %1659 = vmatpush.bf16.msra.mxu0 %v1585
        %1660 = vmatpush.bf16.msra.mxu0 %v1584
        %1661 = vmatmul.bf16.gmra.mxu0 %v1441
        %v1662 = vpop.f32.mrf.mxu0
        %v1663 = vadd.f32 %v1650, %v1662
        %v1664 = vpop.f32.mrf.mxu0
        %1665 = vdwg.mxu0
        %1666 = vmatpush.bf16.msra.mxu0 %v1599
        %1667 = vmatpush.bf16.msra.mxu0 %v1598
        %1668 = vmatpush.bf16.msra.mxu0 %v1597
        %1669 = vmatpush.bf16.msra.mxu0 %v1596
        %1670 = vmatpush.bf16.msra.mxu0 %v1595
        %1671 = vmatpush.bf16.msra.mxu0 %v1594
        %1672 = vmatpush.bf16.msra.mxu0 %v1593
        %1673 = vmatpush.bf16.msra.mxu0 %v1592
        %1674 = vmatmul.bf16.gmra.mxu0 %v1442
        %v1675 = vpop.f32.mrf.mxu0
        %v1676 = vadd.f32 %v1663, %v1675
        %v1677 = vpop.f32.mrf.mxu0
        %1678 = vdwg.mxu0
        %1679 = vmatpush.bf16.msra.mxu0 %v1607
        %1680 = vmatpush.bf16.msra.mxu0 %v1606
        %1681 = vmatpush.bf16.msra.mxu0 %v1605
        %1682 = vmatpush.bf16.msra.mxu0 %v1604
        %1683 = vmatpush.bf16.msra.mxu0 %v1603
        %1684 = vmatpush.bf16.msra.mxu0 %v1602
        %1685 = vmatpush.bf16.msra.mxu0 %v1601
        %1686 = vmatpush.bf16.msra.mxu0 %v1600
        %1687 = vmatmul.bf16.gmra.mxu0 %v1443
        %v1688 = vpop.f32.mrf.mxu0
        %v1689 = vadd.f32 %v1676, %v1688
        %v1690 = vpop.f32.mrf.mxu0
        %1691 = vdwg.mxu0
        %1692 = vst [vmem:[%s247] sm:$0xff] %v1689
        %s1693 = sand.u32 %s119, 1
        %s1694 = scalar_lea.sflag [#allocation5], %s1693
        %s1695 = sand.u32 %s119, 1
        %s1696 = smul.addr %s1695, 8
        %s1697 = scalar_lea.vmem [#allocation9], %s1696
        // Predicated region
        $region49: #{tpu_custom_call.1} parent=35 // pred_check
          %p1698 = pneg %p129
        $region50: #{tpu_custom_call.1} parent=35 // pred_check_branch
          %1700 = sbr.rel (%p1698) target = $region52
        $region51: #{tpu_custom_call.1} parent=35 // pred_region
          %1702 = vsyncadd %s1694, 0
          %s1703 = smul.addr %s22, 8
          %s1704 = scalar_lea.hbm %s4, %s1703
          %s1706 = sshll.u32 %s1697, 4
          %s1707 = int_to_ptr.vmem [resolvable:$true] %s1706
          %s1708 = sshll.u32 %s1704, 4
          %s1709 = int_to_ptr.hbm [resolvable:$true] %s1708
          %1711 = dma.vmem_to_hbm [thread:$0]  %s1707, 128, %s1709, %s1694
        $region52: #{tpu_custom_call.1} parent=35 // pred_fallthru
          _
      $region36: #{tpu_custom_call.1} parent=5 // pred_fallthru
        _
      %p1712 = scmp.le.s32.totalorder 2, %s17
      // Predicated region
      $region53: #{tpu_custom_call.1} parent=5 // pred_check
        %p1713 = pneg %p1712
      $region54: #{tpu_custom_call.1} parent=5 // pred_check_branch
        %1715 = sbr.rel (%p1713) target = $region56
      $region55: #{tpu_custom_call.1} parent=5 // pred_region
        %s1716 = ssub.s32 %s17, 2
        // Predicated region
        $region57: #{tpu_custom_call.1} parent=55 // pred_check
          %p1717 = pneg %p135
        $region58: #{tpu_custom_call.1} parent=55 // pred_check_branch
          %1719 = sbr.rel (%p1717) target = $region60
        $region59: #{tpu_custom_call.1} parent=55 // pred_region
          %s1720 = sand.u32 %s120, 1
          %s1721 = scalar_lea.sflag [#allocation5], %s1720
          %s1722 = sand.u32 %s120, 1
          %s1723 = smul.addr %s1722, 8
          %s1724 = scalar_lea.vmem [#allocation9], %s1723
          %1726 = dma.done %s1721, 128
        $region60: #{tpu_custom_call.1} parent=55 // pred_fallthru
          _
      $region56: #{tpu_custom_call.1} parent=5 // pred_fallthru
        _
    $region6: #{tpu_custom_call.1} parent=1 // loop_footer
      %s21 = sadd.s32 1, %s17
    $region7: #{tpu_custom_call.1} parent=1 // loop_footer_branch
      %16 = sbr.rel target = $region3
    $region8: #{tpu_custom_call.1} parent=1 // loop_exit
      _
    %1727 = vsyncpa [#allocation4], 1
    %s1728 = scalar_lea.sflag [#allocation4], 1
    %1729 = vsyncpa %s1728, 1
    %1730 = vsyncpa [#allocation7], 1
    %1731 = vsyncpa [#allocation5], 1
    %s1732 = scalar_lea.sflag [#allocation5], 1
    %1733 = vsyncpa %s1732, 1

</llo_original>
